<compile_context>
chip_gen: v7x
topology: tpu7x:2x2x1
jax: 0.10.0
libtpu: 0.0.40
codegen_flags: <defaults>
</compile_context>

<pallas_src>
import functools

import jax
import jax.numpy as jnp
from jax.experimental import pallas as pl
from jax.experimental.pallas import tpu as pltpu


def _device_vmem_and_tq_cap():
    """Per-generation VMEM capacity and query-tile cap."""
    kind = ""
    try:
        kind = jax.devices()[0].device_kind.lower()
    except Exception:
        pass
    try:
        vmem_cap = int(pltpu.get_tpu_info().vmem_capacity_bytes)
    except Exception:
        vmem_cap = (64 << 20) if "7" in kind else (128 << 20)
    if "v5" in kind:
        tq_cap = 128      # bandwidth-poor, 1 vst slot: keep f32 temporaries small
    elif "v6" in kind:
        tq_cap = 512      # 128 MiB VMEM: fewer grid steps, bigger MXU M dim
    else:
        tq_cap = 256      # v7x (64 MiB VMEM) / unknown: stay conservative
    return vmem_cap, tq_cap


def _vmem_need_bytes(tq, n_pad, c, attn_itemsize):
    need = 2 * (2 * n_pad * c)                 # resident bf16 key block (double-buffered)
    need += 2 * 2 * (4 * c * tq)               # f32 residual-in + f32 out blocks
    need += 2 * (4 * n_pad)                    # key-bias row
    need += 2 * (attn_itemsize * tq * n_pad)   # attention output block
    need += 4 * (4 * tq * n_pad)               # f32 score / exp / softmax temporaries
    need += 2 * (2 * c * c) + 4 * c            # folded weights + bias
    need += (2 << 20)                          # headroom
    return need


def _pick_tq(n_pad, c, attn_itemsize, vmem_cap, tq_cap):
    """Largest multiple of 128 dividing n_pad, <= tq_cap, that fits the VMEM budget."""
    budget = vmem_cap - (8 << 20)
    best = 128
    t = 128
    while t <= min(n_pad, tq_cap):
        if n_pad % t == 0 and _vmem_need_bytes(t, n_pad, c, attn_itemsize) <= budget:
            best = t
        t += 128
    return best


def _self_attn_kernel(xf_ref, xqc_ref, kb_ref, m_ref, wv_ref, bv_ref,
                      out_ref, *attn_refs, tq, n_valid, n_pad):
    # xf_ref : (1, N_pad, C) bf16  keys/values, spatial-major, resident per batch
    # xqc_ref: (1, C, TQ)    f32   residual tile, channel-major (lane-dense)
    # kb_ref : (1, 1, N_pad) f32   precomputed key-bias row  bq^T Wk X
    # m_ref  : (C, C)        bf16  Wq^T Wk
    # wv_ref : (C, C)        bf16  gamma * Wv
    # bv_ref : (C, 1)        f32   gamma * bv
    # out_ref: (1, C, TQ)    f32   lane-dense output tile
    # attn_refs = (attn_ref,) with attn_ref (1, TQ, N_pad) when the map is requested
    i = pl.program_id(1)
    q_start = pl.multiple_of(i * tq, tq)

    xf = xf_ref[0]                                # (N_pad, C) bf16
    xq = xf_ref[0, pl.ds(q_start, tq), :]         # (TQ, C)    bf16, sliced from resident keys

    # Folded query/key projection: pt[n, c'] = sum_c xq[n, c] * (Wq^T Wk)[c, c']
    pt = jnp.dot(xq, m_ref[...],
                 preferred_element_type=jnp.float32).astype(jnp.bfloat16)     # (TQ, C)

    # score'[n, m] = x_n^T (Wq^T Wk) x_m + bq^T Wk x_m (row-constant terms cancel in softmax)
    score = jax.lax.dot_general(pt, xf, (((1,), (1,)), ((), ())),
                                preferred_element_type=jnp.float32)           # (TQ, N_pad)
    score = score + kb_ref[0]                                                 # (1, N_pad) bcast

    if n_valid < n_pad:  # static branch: mask padded key columns
        key_ids = jax.lax.broadcasted_iota(jnp.int32, (1, n_pad), 1)
        score = jnp.where(key_ids < n_valid, score, -1e30)

    mx = jnp.max(score, axis=-1, keepdims=True)
    e = jnp.exp(score - mx)
    attn = e * pl.reciprocal(jnp.sum(e, axis=-1, keepdims=True), approx=True)  # (TQ, N_pad) f32
    if attn_refs:
        attn_refs[0][0] = attn.astype(attn_refs[0].dtype)

    # ctx[n, c] = sum_m attn[n, m] * x[m, c]
    ctx = jnp.dot(attn.astype(jnp.bfloat16), xf,
                  preferred_element_type=jnp.float32)                          # (TQ, C)

    # out[c, n] = gamma * (Wv ctx^T + bv)[c, n] + x[c, n]  (gamma folded into Wv, bv)
    o = jax.lax.dot_general(wv_ref[...], ctx.astype(jnp.bfloat16),
                            (((1,), (1,)), ((), ())),
                            preferred_element_type=jnp.float32)                # (C, TQ)
    out_ref[0] = (o + bv_ref[...] + xqc_ref[0]).astype(out_ref.dtype)


def self_attn_pallas(x_nchw, params, *, tq=None, attn_dtype=jnp.bfloat16,
                     return_attention=True):
    """x_nchw: (B, C, W, H) float32.

    Returns (out (B, C, W, H) f32, attention (B, N, N) attn_dtype).
    attention is None when return_attention=False (skips its HBM writeback).
    """
    B, C, W, H = x_nchw.shape
    N = W * H
    n_pad = max(128, ((N + 127) // 128) * 128)

    # Channel-major f32 view (residual / lane-dense output layout), padded along N.
    x_bcn = x_nchw.reshape(B, C, N).astype(jnp.float32)
    if n_pad != N:
        x_bcn = jnp.pad(x_bcn, ((0, 0), (0, 0), (0, n_pad - N)))
    # Spatial-major bf16 view for the MXU matmuls.
    x_bnc = jnp.transpose(x_bcn, (0, 2, 1)).astype(jnp.bfloat16)               # (B, N_pad, C)

    wq = params["wq"].astype(jnp.float32)          # (C//8, C)
    wk = params["wk"].astype(jnp.float32)          # (C//8, C)
    gamma = params["gamma"].reshape(()).astype(jnp.float32)

    m_fold = (wq.T @ wk).astype(jnp.bfloat16)                                  # (C, C) = Wq^T Wk
    ckv = wk.T @ params["bq"].astype(jnp.float32)                              # (C,)   = Wk^T bq
    kb = jnp.einsum("c,bcm->bm", ckv, x_bcn).reshape(B, 1, n_pad)              # (B, 1, N_pad) f32
    wv_g = (gamma * params["wv"].astype(jnp.float32)).astype(jnp.bfloat16)     # gamma * Wv
    bv_g = (gamma * params["bv"].astype(jnp.float32)).reshape(C, 1)            # gamma * bv (f32)

    vmem_cap, tq_cap = _device_vmem_and_tq_cap()
    attn_itemsize = jnp.dtype(attn_dtype).itemsize if return_attention else 0
    if tq is None:
        tq = _pick_tq(n_pad, C, attn_itemsize, vmem_cap, tq_cap)
    assert n_pad % tq == 0 and tq % 128 == 0, f"tq={tq} must be a 128-multiple dividing {n_pad}"
    nt = n_pad // tq

    need = _vmem_need_bytes(tq, n_pad, C, attn_itemsize)
    vmem_limit = int(min(max(need, 32 << 20), vmem_cap - (4 << 20)))

    kernel = functools.partial(_self_attn_kernel, tq=tq, n_valid=N, n_pad=n_pad)
    const = lambda *shape: pl.BlockSpec(shape, lambda b, i: (0,) * len(shape))

    out_shapes = [jax.ShapeDtypeStruct((B, C, n_pad), jnp.float32)]
    out_specs = [pl.BlockSpec((1, C, tq), lambda b, i: (b, 0, i))]             # lane-dense out
    if return_attention:
        out_shapes.append(jax.ShapeDtypeStruct((B, n_pad, n_pad), attn_dtype))
        out_specs.append(pl.BlockSpec((1, tq, n_pad), lambda b, i: (b, i, 0)))

    results = pl.pallas_call(
        kernel,
        out_shape=tuple(out_shapes),
        grid_spec=pltpu.PrefetchScalarGridSpec(
            num_scalar_prefetch=0,
            grid=(B, nt),
            in_specs=[
                pl.BlockSpec((1, n_pad, C), lambda b, i: (b, 0, 0)),   # keys/values (resident per b)
                pl.BlockSpec((1, C, tq), lambda b, i: (b, 0, i)),      # residual tile (f32)
                pl.BlockSpec((1, 1, n_pad), lambda b, i: (b, 0, 0)),   # key-bias row
                const(C, C),   # Wq^T Wk
                const(C, C),   # gamma * Wv
                const(C, 1),   # gamma * bv
            ],
            out_specs=out_specs,
        ),
        compiler_params=pltpu.CompilerParams(
            # Batch axis parallel (megacore splits over B, preserving the resident
            # key-block reuse across query tiles); query-tile axis arbitrary.
            dimension_semantics=("parallel", "arbitrary"),
            vmem_limit_bytes=vmem_limit,
        ),
    )(x_bnc, x_bcn, kb, m_fold, wv_g, bv_g)

    if return_attention:
        out_bcn, attn = results
    else:
        out_bcn = results[0] if isinstance(results, (tuple, list)) else results
        attn = None

    out_nchw = out_bcn[:, :, :N].reshape(B, C, W, H)
    if return_attention and n_pad != N:
        attn = attn[:, :N, :N]
    return out_nchw, attn


def _reference(x_nchw, params):
    """Plain-JAX (f32) reference matching the PyTorch forward."""
    B, C, W, H = x_nchw.shape
    N = W * H
    x_flat = x_nchw.reshape(B, C, N)

    def conv1x1(w, b):
        return jnp.einsum("oc,bcn->bon", w, x_flat) + b[None, :, None]

    q = conv1x1(params["wq"], params["bq"])            # (B, C//8, N)
    k = conv1x1(params["wk"], params["bk"])            # (B, C//8, N)
    v = conv1x1(params["wv"], params["bv"])            # (B, C, N)
    score = jnp.einsum("bcn,bcm->bnm", q, k)           # (B, N, N)
    attn = jax.nn.softmax(score, axis=-1)
    out = jnp.einsum("bcm,bnm->bcn", v, attn).reshape(B, C, W, H)
    out = params["gamma"][0] * out + x_nchw
    return out, attn


if __name__ == "__main__":
    key = jax.random.PRNGKey(0)
    B, C, W, H = 2, 32, 16, 16       # in_dim=32 -> query/key channels = 4, N = 256
    C8 = C // 8

    ks = jax.random.split(key, 8)
    x = jax.random.normal(ks[0], (B, C, W, H), dtype=jnp.float32)
    params = {
        "wq": jax.random.normal(ks[1], (C8, C), dtype=jnp.float32) * 0.1,
        "wk": jax.random.normal(ks[2], (C8, C), dtype=jnp.float32) * 0.1,
        "wv": jax.random.normal(ks[3], (C, C), dtype=jnp.float32) * 0.1,
        "bq": jax.random.normal(ks[4], (C8,), dtype=jnp.float32) * 0.1,
        "bk": jax.random.normal(ks[5], (C8,), dtype=jnp.float32) * 0.1,
        "bv": jax.random.normal(ks[6], (C,), dtype=jnp.float32) * 0.1,
        # nn.Parameter(torch.zeros(1)) -> shape (1,); nonzero to exercise the scaled path.
        "gamma": jnp.array([0.5], dtype=jnp.float32),
    }

    ref_out, ref_attn = _reference(x, params)

    # Default path: generation-aware tile size, bf16 attention map (half the writeback).
    out, attn = self_attn_pallas(x, params)
    out, attn = jax.block_until_ready((out, attn))
    assert out.shape == (B, C, W, H) and attn.shape == (B, W * H, W * H)
    assert jnp.allclose(out, ref_out, atol=5e-2, rtol=5e-2)
    assert jnp.allclose(attn.astype(jnp.float32), ref_attn, atol=2e-2, rtol=2e-2)

    # Explicit 128-row tiles with a full-precision attention map.
    out2, attn2 = self_attn_pallas(x, params, tq=128, attn_dtype=jnp.float32)
    out2, attn2 = jax.block_until_ready((out2, attn2))
    assert jnp.allclose(out2, ref_out, atol=5e-2, rtol=5e-2)
    assert jnp.allclose(attn2, ref_attn, atol=2e-2, rtol=2e-2)

    # N not a multiple of 128 -> padded to 128 with masked softmax keys.
    Wp, Hp = 10, 10
    xp = jax.random.normal(ks[7], (B, C, Wp, Hp), dtype=jnp.float32)
    ref_out_p, ref_attn_p = _reference(xp, params)
    out_p, attn_p = self_attn_pallas(xp, params)
    out_p, attn_p = jax.block_until_ready((out_p, attn_p))
    assert out_p.shape == (B, C, Wp, Hp) and attn_p.shape == (B, Wp * Hp, Wp * Hp)
    assert jnp.allclose(out_p, ref_out_p, atol=5e-2, rtol=5e-2)
    assert jnp.allclose(attn_p.astype(jnp.float32), ref_attn_p, atol=2e-2, rtol=2e-2)

    # Output-only path (skips the attention-map HBM writeback entirely).
    out3, attn3 = self_attn_pallas(x, params, return_attention=False)
    out3 = jax.block_until_ready(out3)
    assert attn3 is None
    assert jnp.allclose(out3, ref_out, atol=5e-2, rtol=5e-2)

    print("KERNEL_OK")
</pallas_src>

<mosaic_0001>
module attributes {stable_mosaic.version = 11 : i64} {
  func.func @_self_attn_kernel(%arg0: i32, %arg1: i32, %arg2: memref<1x256x32xbf16, #tpu.memory_space<vmem>>, %arg3: memref<1x32x256xf32, #tpu.memory_space<vmem>>, %arg4: memref<1x1x256xf32, #tpu.memory_space<vmem>>, %arg5: memref<32x32xbf16, #tpu.memory_space<vmem>>, %arg6: memref<32x32xbf16, #tpu.memory_space<vmem>>, %arg7: memref<32x1xf32, #tpu.memory_space<vmem>>, %arg8: memref<1x32x256xf32, #tpu.memory_space<vmem>>, %arg9: memref<1x256x256xbf16, #tpu.memory_space<vmem>>) attributes {dimension_semantics = [#tpu.dimension_semantics<parallel>, #tpu.dimension_semantics<arbitrary>], iteration_bounds = array<i64: 2, 1>, scalar_prefetch = 0 : i64, scratch_operands = 0 : i64, tpu.core_type = #tpu.core_type<tc>, window_params = [{transform_indices = @transform_0, window_bounds = array<i64: 1, 256, 32>}, {transform_indices = @transform_1, window_bounds = array<i64: 1, 32, 256>}, {transform_indices = @transform_2, window_bounds = array<i64: 1, 1, 256>}, {pipeline_mode = #tpu.pipeline_mode<synchronous>, transform_indices = @transform_3, window_bounds = array<i64: 32, 32>}, {pipeline_mode = #tpu.pipeline_mode<synchronous>, transform_indices = @transform_4, window_bounds = array<i64: 32, 32>}, {pipeline_mode = #tpu.pipeline_mode<synchronous>, transform_indices = @transform_5, window_bounds = array<i64: 32, 1>}, {transform_indices = @transform_6, window_bounds = array<i64: 1, 32, 256>}, {transform_indices = @transform_7, window_bounds = array<i64: 1, 256, 256>}]} {
    %c256_i32 = arith.constant 256 : i32
    %0 = arith.muli %arg1, %c256_i32 : i32
    %1 = tpu.assume_multiple %0, 256 : i32
    %c0 = arith.constant 0 : index
    %c0_0 = arith.constant 0 : index
    %c0_1 = arith.constant 0 : index
    %2 = vector.load %arg2[%c0, %c0_0, %c0_1] : memref<1x256x32xbf16, #tpu.memory_space<vmem>>, vector<1x256x32xbf16>
    %3 = vector.shape_cast %2 : vector<1x256x32xbf16> to vector<256x32xbf16>
    %c0_2 = arith.constant 0 : index
    %4 = arith.index_cast %1 : i32 to index
    %c0_3 = arith.constant 0 : index
    %5 = vector.load %arg2[%c0_2, %4, %c0_3] : memref<1x256x32xbf16, #tpu.memory_space<vmem>>, vector<1x256x32xbf16>
    %6 = vector.shape_cast %5 : vector<1x256x32xbf16> to vector<256x32xbf16>
    %c0_4 = arith.constant 0 : index
    %c0_5 = arith.constant 0 : index
    %7 = vector.load %arg5[%c0_4, %c0_5] : memref<32x32xbf16, #tpu.memory_space<vmem>>, vector<32x32xbf16>
    %cst = arith.constant dense<0.000000e+00> : vector<256x32xf32>
    %8 = tpu.matmul %6, %7, %cst {dimension_numbers = #tpu.dot_dimension_numbers<[1], [0], [0], [1], [0, 0, 1, 1], [], []>} : vector<256x32xbf16>, vector<32x32xbf16>, vector<256x32xf32> -> vector<256x32xf32>
    %9 = arith.truncf %8 : vector<256x32xf32> to vector<256x32xbf16>
    %cst_6 = arith.constant dense<0.000000e+00> : vector<256x256xf32>
    %10 = tpu.matmul %9, %3, %cst_6 {dimension_numbers = #tpu.dot_dimension_numbers<[1], [1], [0], [0], [0, 0, 1, 0], [], []>} : vector<256x32xbf16>, vector<256x32xbf16>, vector<256x256xf32> -> vector<256x256xf32>
    %c0_7 = arith.constant 0 : index
    %c0_8 = arith.constant 0 : index
    %c0_9 = arith.constant 0 : index
    %11 = vector.load %arg4[%c0_7, %c0_8, %c0_9] : memref<1x1x256xf32, #tpu.memory_space<vmem>>, vector<1x1x256xf32>
    %12 = vector.shape_cast %11 : vector<1x1x256xf32> to vector<1x256xf32>
    %13 = vector.broadcast %12 : vector<1x256xf32> to vector<256x256xf32>
    %14 = arith.addf %10, %13 : vector<256x256xf32>
    %cst_10 = arith.constant dense<0xFF800000> : vector<256xf32>
    %15 = vector.multi_reduction <maximumf>, %14, %cst_10 [1] : vector<256x256xf32> to vector<256xf32>
    %16 = vector.shape_cast %15 : vector<256xf32> to vector<256x1xf32>
    %17 = vector.broadcast %16 : vector<256x1xf32> to vector<256x256xf32>
    %18 = arith.subf %14, %17 : vector<256x256xf32>
    %19 = math.exp %18 : vector<256x256xf32>
    %cst_11 = arith.constant dense<0.000000e+00> : vector<256xf32>
    %20 = vector.multi_reduction <add>, %19, %cst_11 [1] : vector<256x256xf32> to vector<256xf32>
    %21 = vector.shape_cast %20 : vector<256xf32> to vector<256x1xf32>
    %22 = tpu.reciprocal %21 {approx = true} : vector<256x1xf32> -> vector<256x1xf32>
    %23 = vector.broadcast %22 : vector<256x1xf32> to vector<256x256xf32>
    %24 = arith.mulf %19, %23 : vector<256x256xf32>
    %25 = arith.truncf %24 : vector<256x256xf32> to vector<256x256xbf16>
    %c0_12 = arith.constant 0 : index
    %c0_13 = arith.constant 0 : index
    %c0_14 = arith.constant 0 : index
    %26 = vector.load %arg9[%c0_12, %c0_13, %c0_14] : memref<1x256x256xbf16, #tpu.memory_space<vmem>>, vector<1x256x256xbf16>
    %27 = vector.shape_cast %26 : vector<1x256x256xbf16> to vector<256x256xbf16>
    %28 = vector.shape_cast %25 : vector<256x256xbf16> to vector<1x256x256xbf16>
    tpu.vector_store %arg9[%c0_12, %c0_13, %c0_14], %28 {strides = array<i32>} : memref<1x256x256xbf16, #tpu.memory_space<vmem>>, vector<1x256x256xbf16>,
    %29 = arith.truncf %24 : vector<256x256xf32> to vector<256x256xbf16>
    %cst_15 = arith.constant dense<0.000000e+00> : vector<256x32xf32>
    %30 = tpu.matmul %29, %3, %cst_15 {dimension_numbers = #tpu.dot_dimension_numbers<[1], [0], [0], [1], [0, 0, 1, 1], [], []>} : vector<256x256xbf16>, vector<256x32xbf16>, vector<256x32xf32> -> vector<256x32xf32>
    %c0_16 = arith.constant 0 : index
    %c0_17 = arith.constant 0 : index
    %31 = vector.load %arg6[%c0_16, %c0_17] : memref<32x32xbf16, #tpu.memory_space<vmem>>, vector<32x32xbf16>
    %32 = arith.truncf %30 : vector<256x32xf32> to vector<256x32xbf16>
    %cst_18 = arith.constant dense<0.000000e+00> : vector<32x256xf32>
    %33 = tpu.matmul %31, %32, %cst_18 {dimension_numbers = #tpu.dot_dimension_numbers<[1], [1], [0], [0], [0, 0, 1, 0], [], []>} : vector<32x32xbf16>, vector<256x32xbf16>, vector<32x256xf32> -> vector<32x256xf32>
    %c0_19 = arith.constant 0 : index
    %c0_20 = arith.constant 0 : index
    %34 = vector.load %arg7[%c0_19, %c0_20] : memref<32x1xf32, #tpu.memory_space<vmem>>, vector<32x1xf32>
    %35 = vector.broadcast %34 : vector<32x1xf32> to vector<32x256xf32>
    %36 = arith.addf %33, %35 : vector<32x256xf32>
    %c0_21 = arith.constant 0 : index
    %c0_22 = arith.constant 0 : index
    %c0_23 = arith.constant 0 : index
    %37 = vector.load %arg3[%c0_21, %c0_22, %c0_23] : memref<1x32x256xf32, #tpu.memory_space<vmem>>, vector<1x32x256xf32>
    %38 = vector.shape_cast %37 : vector<1x32x256xf32> to vector<32x256xf32>
    %39 = arith.addf %36, %38 : vector<32x256xf32>
    %c0_24 = arith.constant 0 : index
    %c0_25 = arith.constant 0 : index
    %c0_26 = arith.constant 0 : index
    %40 = vector.load %arg8[%c0_24, %c0_25, %c0_26] : memref<1x32x256xf32, #tpu.memory_space<vmem>>, vector<1x32x256xf32>
    %41 = vector.shape_cast %40 : vector<1x32x256xf32> to vector<32x256xf32>
    %42 = vector.shape_cast %39 : vector<32x256xf32> to vector<1x32x256xf32>
    tpu.vector_store %arg8[%c0_24, %c0_25, %c0_26], %42 {strides = array<i32>} : memref<1x32x256xf32, #tpu.memory_space<vmem>>, vector<1x32x256xf32>,
    return
  }
  func.func @transform_0(%arg0: i32, %arg1: i32) -> (i32, i32, i32) {
    %c0_i32 = arith.constant 0 : i32
    %c0_i32_0 = arith.constant 0 : i32
    %c0_i32_1 = arith.constant 0 : i32
    return %arg0, %c0_i32, %c0_i32_0 : i32, i32, i32
  }
  func.func @transform_1(%arg0: i32, %arg1: i32) -> (i32, i32, i32) {
    %c0_i32 = arith.constant 0 : i32
    %c0_i32_0 = arith.constant 0 : i32
    return %arg0, %c0_i32, %arg1 : i32, i32, i32
  }
  func.func @transform_2(%arg0: i32, %arg1: i32) -> (i32, i32, i32) {
    %c0_i32 = arith.constant 0 : i32
    %c0_i32_0 = arith.constant 0 : i32
    %c0_i32_1 = arith.constant 0 : i32
    return %arg0, %c0_i32, %c0_i32_0 : i32, i32, i32
  }
  func.func @transform_3(%arg0: i32, %arg1: i32) -> (i32, i32) {
    %c0_i32 = arith.constant 0 : i32
    %c0_i32_0 = arith.constant 0 : i32
    %c0_i32_1 = arith.constant 0 : i32
    return %c0_i32, %c0_i32_0 : i32, i32
  }
  func.func @transform_4(%arg0: i32, %arg1: i32) -> (i32, i32) {
    %c0_i32 = arith.constant 0 : i32
    %c0_i32_0 = arith.constant 0 : i32
    %c0_i32_1 = arith.constant 0 : i32
    return %c0_i32, %c0_i32_0 : i32, i32
  }
  func.func @transform_5(%arg0: i32, %arg1: i32) -> (i32, i32) {
    %c0_i32 = arith.constant 0 : i32
    %c0_i32_0 = arith.constant 0 : i32
    %c0_i32_1 = arith.constant 0 : i32
    return %c0_i32, %c0_i32_0 : i32, i32
  }
  func.func @transform_6(%arg0: i32, %arg1: i32) -> (i32, i32, i32) {
    %c0_i32 = arith.constant 0 : i32
    %c0_i32_0 = arith.constant 0 : i32
    return %arg0, %c0_i32, %arg1 : i32, i32, i32
  }
  func.func @transform_7(%arg0: i32, %arg1: i32) -> (i32, i32, i32) {
    %c0_i32 = arith.constant 0 : i32
    %c0_i32_0 = arith.constant 0 : i32
    return %arg0, %arg1, %c0_i32 : i32, i32, i32
  }
}

</mosaic_0001>

<llo_original>
// kernel: tpu_custom_call.1
$region0: #{tpu_custom_call.1}
  #allocation0 [shape = 'u32[]', space=smem, size = 0x4, offset = 0x4, fixed_abs, tag = 'smem constant byte address 0x4 - core index']
  #allocation1 [shape = 'u32[144,128]{1,0:T(1,128)}', space=vmem, size = 0x12000, scoped, tag = 'internal scratch']
  %s0 = inlined_call_operand.vmem [shape: bf16[2,256,32], index: 0, kind: input, shape index: {}]
  %s1 = inlined_call_operand.vmem [shape: f32[2,32,256], index: 1, kind: input, shape index: {}]
  %s2 = inlined_call_operand.vmem [shape: f32[2,1,256], index: 2, kind: input, shape index: {}]
  %s3 = inlined_call_operand.vmem [shape: bf16[32,32], index: 3, kind: input, shape index: {}]
  %s4 = inlined_call_operand.vmem [shape: bf16[32,32], index: 4, kind: input, shape index: {}]
  %s5 = inlined_call_operand.vmem [shape: f32[32,1], index: 5, kind: input, shape index: {}]
  %s6 = inlined_call_operand.hbm [shape: f32[2,32,256], index: 6, kind: output, shape index: {0}]
  %s7 = inlined_call_operand.hbm [shape: bf16[2,256,256], index: 7, kind: output, shape index: {1}]
  %8 = xla_tuple %s6, %s7
  %s9 = sld [smem:[#allocation0]]
  $region65: #{tpu_custom_call.1} parent=0
    _
  %s11 = ssub.s32 1, %s9
  %s12 = scalar_select 0, %s11, %s9
  $region1: #{tpu_custom_call.1} parent=0
    #allocation2 [shape = 'u8[65536]{0}', space=vmem, size = 0x10000, scoped, tag = 'output window, operand 0']
    #allocation3 [shape = 's32[2]{0}', space=sflag, size = 0x8, scoped, tag = 'scoped memory for tpu_custom_call.1']
    #allocation4 [shape = 'u8[262144]{0}', space=vmem, size = 0x40000, scoped, tag = 'output window, operand 1']
    #allocation5 [shape = 's32[2]{0}', space=sflag, size = 0x8, scoped, tag = 'scoped memory for tpu_custom_call.1']
    %13 = vsyncpa [#allocation3], 0
    %s14 = scalar_lea.sflag [#allocation3], 1
    %15 = vsyncpa %s14, 0
    %16 = vsyncpa [#allocation5], 0
    %s17 = scalar_lea.sflag [#allocation5], 1
    %18 = vsyncpa %s17, 0
    loop: start=0, step=1, limit=4
    $region2: #{tpu_custom_call.1} parent=1 // loop_pre_header
      _
    $region3: #{tpu_custom_call.1} parent=1 // loop_header
      %s20 = sphi 0, %s24
      %p21 = scmp.ge.s32.totalorder %s20, 4
      %s27 = sphi 0, %s39
      %s28 = sphi 0, %s35
      %s29 = sphi 0, %s27
      %s30 = sphi 0, %s28
      %s31 = sphi 0, %s29
      %s32 = sphi 0, %s30
      %s42 = sphi 0, %s44
      %s45 = sphi 0, %s42
      %s46 = sphi 0, %s45
      %s62 = sphi 0, %s46
      %s70 = sphi 0, %s72
      %s73 = sphi 0, %s70
      %s74 = sphi 0, %s73
      %s90 = sphi 0, %s74
      %s96 = sphi 0, %s98
      %s99 = sphi 0, %s96
      %s100 = sphi 0, %s99
      %s116 = sphi 0, %s100
      %s120 = sphi 0, %s120
      %s122 = sphi 0, %s120
      %s123 = sphi 0, %s122
      %s137 = sphi 0, %s123
      %s141 = sphi 0, %s141
      %s143 = sphi 0, %s141
      %s144 = sphi 0, %s143
      %s158 = sphi 0, %s144
      %s162 = sphi 0, %s162
      %s164 = sphi 0, %s162
      %s165 = sphi 0, %s164
      %s179 = sphi 0, %s165
      %s187 = sphi 0, %s189
      %s190 = sphi 0, %s187
      %s191 = sphi 0, %s190
      %s207 = sphi 0, %s191
      %s215 = sphi 0, %s217
      %s218 = sphi 0, %s215
      %s219 = sphi 0, %s218
      %s235 = sphi 0, %s219
    $region4: #{tpu_custom_call.1} parent=1 // loop_header_branch
      %23 = sbr.rel (%p21) target = $region8
    $region5: #{tpu_custom_call.1} parent=1 // loop_body
      %s25 = ssub.s32 %s20, 1
      %s26 = ssub.s32 %s20, 2
      %s33 = sadd.s32 1, %s28
      %p34 = scmp.ge.s32.totalorder %s33, 1
      %s35 = scalar_select %p34, 0, %s33
      %s36 = sadd.s32 1, %s27
      %s37 = scalar_select %p34, %s36, %s27
      %p38 = scmp.ge.s32.totalorder %s37, 2
      %s39 = scalar_select %p38, 0, %s37
      %s40 = ssub.s32 %s27, %s39
      %p41 = scmp.eq.s32.totalorder %s40, 0
      %s43 = sadd.s32 %s42, 1
      %s44 = scalar_select %p41, %s42, %s43
      %p47 = pneg %p41
      %p48 = scmp.eq.s32.totalorder %s20, 1
      %p49 = por %p47, %p48
      %p50 = scmp.ne.s32.totalorder %s42, %s45
      %p51 = scmp.eq.s32.totalorder %s20, 0
      %p52 = por %p50, %p51
      %p53 = scmp.ne.s32.totalorder %s42, %s45
      %p54 = scmp.eq.s32.totalorder %s25, 1
      %p55 = por %p53, %p54
      %p56 = scmp.ne.s32.totalorder %s45, %s46
      %p57 = scmp.eq.s32.totalorder %s25, 0
      %p58 = por %p56, %p57
      %p59 = scmp.ne.s32.totalorder %s45, %s46
      %p60 = scmp.eq.s32.totalorder %s26, 1
      %p61 = por %p59, %p60
      %p63 = scmp.ne.s32.totalorder %s46, %s62
      %p64 = scmp.eq.s32.totalorder %s26, 0
      %p65 = por %p63, %p64
      %s66 = ssub.s32 %s27, %s39
      %s67 = ssub.s32 %s28, %s35
      %s68 = sor.u32 %s66, %s67
      %p69 = scmp.eq.s32.totalorder %s68, 0
      %s71 = sadd.s32 %s70, 1
      %s72 = scalar_select %p69, %s70, %s71
      %p75 = pneg %p69
      %p76 = scmp.eq.s32.totalorder %s20, 1
      %p77 = por %p75, %p76
      %p78 = scmp.ne.s32.totalorder %s70, %s73
      %p79 = scmp.eq.s32.totalorder %s20, 0
      %p80 = por %p78, %p79
      %p81 = scmp.ne.s32.totalorder %s70, %s73
      %p82 = scmp.eq.s32.totalorder %s25, 1
      %p83 = por %p81, %p82
      %p84 = scmp.ne.s32.totalorder %s73, %s74
      %p85 = scmp.eq.s32.totalorder %s25, 0
      %p86 = por %p84, %p85
      %p87 = scmp.ne.s32.totalorder %s73, %s74
      %p88 = scmp.eq.s32.totalorder %s26, 1
      %p89 = por %p87, %p88
      %p91 = scmp.ne.s32.totalorder %s74, %s90
      %p92 = scmp.eq.s32.totalorder %s26, 0
      %p93 = por %p91, %p92
      %s94 = ssub.s32 %s27, %s39
      %p95 = scmp.eq.s32.totalorder %s94, 0
      %s97 = sadd.s32 %s96, 1
      %s98 = scalar_select %p95, %s96, %s97
      %p101 = pneg %p95
      %p102 = scmp.eq.s32.totalorder %s20, 1
      %p103 = por %p101, %p102
      %p104 = scmp.ne.s32.totalorder %s96, %s99
      %p105 = scmp.eq.s32.totalorder %s20, 0
      %p106 = por %p104, %p105
      %p107 = scmp.ne.s32.totalorder %s96, %s99
      %p108 = scmp.eq.s32.totalorder %s25, 1
      %p109 = por %p107, %p108
      %p110 = scmp.ne.s32.totalorder %s99, %s100
      %p111 = scmp.eq.s32.totalorder %s25, 0
      %p112 = por %p110, %p111
      %p113 = scmp.ne.s32.totalorder %s99, %s100
      %p114 = scmp.eq.s32.totalorder %s26, 1
      %p115 = por %p113, %p114
      %p117 = scmp.ne.s32.totalorder %s100, %s116
      %p118 = scmp.eq.s32.totalorder %s26, 0
      %p119 = por %p117, %p118
      %s121 = sadd.s32 %s120, 1
      %p124 = scmp.eq.s32.totalorder %s20, 1
      %p125 = scmp.ne.s32.totalorder %s120, %s122
      %p126 = scmp.eq.s32.totalorder %s20, 0
      %p127 = por %p125, %p126
      %p128 = scmp.ne.s32.totalorder %s120, %s122
      %p129 = scmp.eq.s32.totalorder %s25, 1
      %p130 = por %p128, %p129
      %p131 = scmp.ne.s32.totalorder %s122, %s123
      %p132 = scmp.eq.s32.totalorder %s25, 0
      %p133 = por %p131, %p132
      %p134 = scmp.ne.s32.totalorder %s122, %s123
      %p135 = scmp.eq.s32.totalorder %s26, 1
      %p136 = por %p134, %p135
      %p138 = scmp.ne.s32.totalorder %s123, %s137
      %p139 = scmp.eq.s32.totalorder %s26, 0
      %p140 = por %p138, %p139
      %s142 = sadd.s32 %s141, 1
      %p145 = scmp.eq.s32.totalorder %s20, 1
      %p146 = scmp.ne.s32.totalorder %s141, %s143
      %p147 = scmp.eq.s32.totalorder %s20, 0
      %p148 = por %p146, %p147
      %p149 = scmp.ne.s32.totalorder %s141, %s143
      %p150 = scmp.eq.s32.totalorder %s25, 1
      %p151 = por %p149, %p150
      %p152 = scmp.ne.s32.totalorder %s143, %s144
      %p153 = scmp.eq.s32.totalorder %s25, 0
      %p154 = por %p152, %p153
      %p155 = scmp.ne.s32.totalorder %s143, %s144
      %p156 = scmp.eq.s32.totalorder %s26, 1
      %p157 = por %p155, %p156
      %p159 = scmp.ne.s32.totalorder %s144, %s158
      %p160 = scmp.eq.s32.totalorder %s26, 0
      %p161 = por %p159, %p160
      %s163 = sadd.s32 %s162, 1
      %p166 = scmp.eq.s32.totalorder %s20, 1
      %p167 = scmp.ne.s32.totalorder %s162, %s164
      %p168 = scmp.eq.s32.totalorder %s20, 0
      %p169 = por %p167, %p168
      %p170 = scmp.ne.s32.totalorder %s162, %s164
      %p171 = scmp.eq.s32.totalorder %s25, 1
      %p172 = por %p170, %p171
      %p173 = scmp.ne.s32.totalorder %s164, %s165
      %p174 = scmp.eq.s32.totalorder %s25, 0
      %p175 = por %p173, %p174
      %p176 = scmp.ne.s32.totalorder %s164, %s165
      %p177 = scmp.eq.s32.totalorder %s26, 1
      %p178 = por %p176, %p177
      %p180 = scmp.ne.s32.totalorder %s165, %s179
      %p181 = scmp.eq.s32.totalorder %s26, 0
      %p182 = por %p180, %p181
      %s183 = ssub.s32 %s27, %s39
      %s184 = ssub.s32 %s28, %s35
      %s185 = sor.u32 %s183, %s184
      %p186 = scmp.eq.s32.totalorder %s185, 0
      %s188 = sadd.s32 %s187, 1
      %s189 = scalar_select %p186, %s187, %s188
      %p192 = pneg %p186
      %p193 = scmp.eq.s32.totalorder %s20, 1
      %p194 = por %p192, %p193
      %p195 = scmp.ne.s32.totalorder %s187, %s190
      %p196 = scmp.eq.s32.totalorder %s20, 0
      %p197 = por %p195, %p196
      %p198 = scmp.ne.s32.totalorder %s187, %s190
      %p199 = scmp.eq.s32.totalorder %s25, 1
      %p200 = por %p198, %p199
      %p201 = scmp.ne.s32.totalorder %s190, %s191
      %p202 = scmp.eq.s32.totalorder %s25, 0
      %p203 = por %p201, %p202
      %p204 = scmp.ne.s32.totalorder %s190, %s191
      %p205 = scmp.eq.s32.totalorder %s26, 1
      %p206 = por %p204, %p205
      %p208 = scmp.ne.s32.totalorder %s191, %s207
      %p209 = scmp.eq.s32.totalorder %s26, 0
      %p210 = por %p208, %p209
      %s211 = ssub.s32 %s27, %s39
      %s212 = ssub.s32 %s28, %s35
      %s213 = sor.u32 %s211, %s212
      %p214 = scmp.eq.s32.totalorder %s213, 0
      %s216 = sadd.s32 %s215, 1
      %s217 = scalar_select %p214, %s215, %s216
      %p220 = pneg %p214
      %p221 = scmp.eq.s32.totalorder %s20, 1
      %p222 = por %p220, %p221
      %p223 = scmp.ne.s32.totalorder %s215, %s218
      %p224 = scmp.eq.s32.totalorder %s20, 0
      %p225 = por %p223, %p224
      %p226 = scmp.ne.s32.totalorder %s215, %s218
      %p227 = scmp.eq.s32.totalorder %s25, 1
      %p228 = por %p226, %p227
      %p229 = scmp.ne.s32.totalorder %s218, %s219
      %p230 = scmp.eq.s32.totalorder %s25, 0
      %p231 = por %p229, %p230
      %p232 = scmp.ne.s32.totalorder %s218, %s219
      %p233 = scmp.eq.s32.totalorder %s26, 1
      %p234 = por %p232, %p233
      %p236 = scmp.ne.s32.totalorder %s219, %s235
      %p237 = scmp.eq.s32.totalorder %s26, 0
      %p238 = por %p236, %p237
      %p239 = scmp.le.s32.totalorder 1, %s20
      %p240 = scmp.lt.s32.totalorder %s20, 3
      %p241 = pnand %p239, %p240
      %p242 = pneg %p241
      // Predicated region
      $region9: #{tpu_custom_call.1} parent=5 // pred_check
        _
      $region10: #{tpu_custom_call.1} parent=5 // pred_check_branch
        %244 = sbr.rel (%p241) target = $region12
      $region11: #{tpu_custom_call.1} parent=5 // pred_region
        %s245 = ssub.s32 %s20, 1
        // Predicated region
        $region13: #{tpu_custom_call.1} parent=11 // pred_check
          %p246 = pneg %p133
        $region14: #{tpu_custom_call.1} parent=11 // pred_check_branch
          %248 = sbr.rel (%p246) target = $region16
        $region15: #{tpu_custom_call.1} parent=11 // pred_region
          _
        $region16: #{tpu_custom_call.1} parent=11 // pred_fallthru
          _
        // Predicated region
        $region17: #{tpu_custom_call.1} parent=11 // pred_check
          %p249 = pneg %p154
        $region18: #{tpu_custom_call.1} parent=11 // pred_check_branch
          %251 = sbr.rel (%p249) target = $region20
        $region19: #{tpu_custom_call.1} parent=11 // pred_region
          _
        $region20: #{tpu_custom_call.1} parent=11 // pred_fallthru
          _
        // Predicated region
        $region21: #{tpu_custom_call.1} parent=11 // pred_check
          %p252 = pneg %p175
        $region22: #{tpu_custom_call.1} parent=11 // pred_check_branch
          %254 = sbr.rel (%p252) target = $region24
        $region23: #{tpu_custom_call.1} parent=11 // pred_region
          _
        $region24: #{tpu_custom_call.1} parent=11 // pred_fallthru
          _
      $region12: #{tpu_custom_call.1} parent=5 // pred_fallthru
        _
      %p255 = scmp.lt.s32.totalorder %s20, 2
      // Predicated region
      $region25: #{tpu_custom_call.1} parent=5 // pred_check
        %p256 = pneg %p255
      $region26: #{tpu_custom_call.1} parent=5 // pred_check_branch
        %258 = sbr.rel (%p256) target = $region28
      $region27: #{tpu_custom_call.1} parent=5 // pred_region
        // Predicated region
        $region29: #{tpu_custom_call.1} parent=27 // pred_check
          %p259 = pneg %p52
        $region30: #{tpu_custom_call.1} parent=27 // pred_check_branch
          %261 = sbr.rel (%p259) target = $region32
        $region31: #{tpu_custom_call.1} parent=27 // pred_region
          %p262 = scmp.lt.s32.totalorder %s27, 1
          %s263 = scalar_select %p262, %s27, 1
          %s264 = smul.addr %s263, 32
          %s265 = smul.addr %s264, 4
          %s266 = scalar_lea.vmem %s0, %s265
        $region32: #{tpu_custom_call.1} parent=27 // pred_fallthru
          _
        // Predicated region
        $region33: #{tpu_custom_call.1} parent=27 // pred_check
          %p267 = pneg %p80
        $region34: #{tpu_custom_call.1} parent=27 // pred_check_branch
          %269 = sbr.rel (%p267) target = $region36
        $region35: #{tpu_custom_call.1} parent=27 // pred_region
          %s270 = smul.u32 2, %s28
          %p271 = scmp.lt.s32.totalorder %s27, 1
          %s272 = scalar_select %p271, %s27, 1
          %p273 = scmp.lt.s32.totalorder %s270, 1
          %s274 = scalar_select %p273, %s270, 1
          %s275 = smul.addr %s272, 8
          %s276 = sadd.s32 %s274, %s275
          %s277 = smul.addr %s276, 8
          %s278 = scalar_lea.vmem %s1, %s277
          %s279 = smul.u32 2, %s28
        $region36: #{tpu_custom_call.1} parent=27 // pred_fallthru
          _
        // Predicated region
        $region37: #{tpu_custom_call.1} parent=27 // pred_check
          %p280 = pneg %p106
        $region38: #{tpu_custom_call.1} parent=27 // pred_check_branch
          %282 = sbr.rel (%p280) target = $region40
        $region39: #{tpu_custom_call.1} parent=27 // pred_region
          %p283 = scmp.lt.s32.totalorder %s27, 1
          %s284 = scalar_select %p283, %s27, 1
          %s285 = smul.addr %s284, 2
          %s286 = scalar_lea.vmem %s2, %s285
        $region40: #{tpu_custom_call.1} parent=27 // pred_fallthru
          _
      $region28: #{tpu_custom_call.1} parent=5 // pred_fallthru
        _
      %p287 = scmp.le.s32.totalorder 1, %s20
      %p288 = scmp.lt.s32.totalorder %s20, 3
      %p289 = pnand %p287, %p288
      %p290 = pneg %p289
      // Predicated region
      $region41: #{tpu_custom_call.1} parent=5 // pred_check
        _
      $region42: #{tpu_custom_call.1} parent=5 // pred_check_branch
        %292 = sbr.rel (%p289) target = $region44
      $region43: #{tpu_custom_call.1} parent=5 // pred_region
        %s293 = ssub.s32 %s20, 1
        %p294 = scmp.lt.s32.totalorder %s29, 1
        %s295 = scalar_select %p294, %s29, 1
        %s296 = smul.addr %s295, 32
        %s297 = smul.addr %s296, 4
        %s298 = scalar_lea.vmem %s0, %s297
        %p299 = pneg %p58
        %p300 = pneg %p55
        %s301 = smul.u32 2, %s30
        %p302 = scmp.lt.s32.totalorder %s29, 1
        %s303 = scalar_select %p302, %s29, 1
        %p304 = scmp.lt.s32.totalorder %s301, 1
        %s305 = scalar_select %p304, %s301, 1
        %s306 = smul.addr %s303, 8
        %s307 = sadd.s32 %s305, %s306
        %s308 = smul.addr %s307, 8
        %s309 = scalar_lea.vmem %s1, %s308
        %p310 = pneg %p86
        %p311 = pneg %p83
        %p312 = scmp.lt.s32.totalorder %s29, 1
        %s313 = scalar_select %p312, %s29, 1
        %s314 = smul.addr %s313, 2
        %s315 = scalar_lea.vmem %s2, %s314
        %p316 = pneg %p112
        %p317 = pneg %p109
        %p318 = pneg %p133
        %p319 = pneg %p130
        %p320 = pneg %p154
        %p321 = pneg %p151
        %p322 = pneg %p175
        %p323 = pneg %p172
        %p324 = pneg %p203
        %p325 = pneg %p200
        %s326 = sand.u32 %s190, 1
        %s327 = scalar_lea.sflag [#allocation3], %s326
        %s328 = sand.u32 %s190, 1
        %s329 = smul.addr %s328, 64
        %s330 = scalar_lea.vmem [#allocation2], %s329
        %p331 = pneg %p231
        %p332 = pneg %p228
        %s333 = sand.u32 %s218, 1
        %s334 = scalar_lea.sflag [#allocation5], %s333
        %s335 = sand.u32 %s218, 1
        %s336 = smul.addr %s335, 256
        %s337 = scalar_lea.vmem [#allocation4], %s336
        %p338 = scmp.lt.s32.totalorder %s29, 1
        %s339 = scalar_select %p338, %s29, 1
        %s340 = smul.addr %s339, 32
        %s341 = smul.addr %s340, 4
        %s342 = scalar_lea.vmem %s0, %s341
        %s343 = smul.u32 2, %s30
        %p344 = scmp.lt.s32.totalorder %s29, 1
        %s345 = scalar_select %p344, %s29, 1
        %p346 = scmp.lt.s32.totalorder %s343, 1
        %s347 = scalar_select %p346, %s343, 1
        %s348 = smul.addr %s345, 8
        %s349 = sadd.s32 %s347, %s348
        %s350 = smul.addr %s349, 8
        %s351 = scalar_lea.vmem %s1, %s350
        %s352 = smul.u32 2, %s30
        %p353 = scmp.lt.s32.totalorder %s29, 1
        %s354 = scalar_select %p353, %s29, 1
        %s355 = smul.addr %s354, 2
        %s356 = scalar_lea.vmem %s2, %s355
        %s357 = smul.u32 2, %s30
        %s358 = smul.u32 32, %s30
        %s360 = smul.u32 %s30, 256
        %v361 = vld [vmem:[%s342] sm:$0xf]
        %v362 = vld [vmem:[%s342 + $0x4] sm:$0xf]
        %v363 = vld [vmem:[%s342 + $0x8] sm:$0xf]
        %v364 = vld [vmem:[%s342 + $0xc] sm:$0xf]
        %v365 = vld [vmem:[%s342 + $0x10] sm:$0xf]
        %v366 = vld [vmem:[%s342 + $0x14] sm:$0xf]
        %v367 = vld [vmem:[%s342 + $0x18] sm:$0xf]
        %v368 = vld [vmem:[%s342 + $0x1c] sm:$0xf]
        %v369 = vld [vmem:[%s342 + $0x20] sm:$0xf]
        %v370 = vld [vmem:[%s342 + $0x24] sm:$0xf]
        %v371 = vld [vmem:[%s342 + $0x28] sm:$0xf]
        %v372 = vld [vmem:[%s342 + $0x2c] sm:$0xf]
        %v373 = vld [vmem:[%s342 + $0x30] sm:$0xf]
        %v374 = vld [vmem:[%s342 + $0x34] sm:$0xf]
        %v375 = vld [vmem:[%s342 + $0x38] sm:$0xf]
        %v376 = vld [vmem:[%s342 + $0x3c] sm:$0xf]
        %v377 = vld [vmem:[%s342 + $0x40] sm:$0xf]
        %v378 = vld [vmem:[%s342 + $0x44] sm:$0xf]
        %v379 = vld [vmem:[%s342 + $0x48] sm:$0xf]
        %v380 = vld [vmem:[%s342 + $0x4c] sm:$0xf]
        %v381 = vld [vmem:[%s342 + $0x50] sm:$0xf]
        %v382 = vld [vmem:[%s342 + $0x54] sm:$0xf]
        %v383 = vld [vmem:[%s342 + $0x58] sm:$0xf]
        %v384 = vld [vmem:[%s342 + $0x5c] sm:$0xf]
        %v385 = vld [vmem:[%s342 + $0x60] sm:$0xf]
        %v386 = vld [vmem:[%s342 + $0x64] sm:$0xf]
        %v387 = vld [vmem:[%s342 + $0x68] sm:$0xf]
        %v388 = vld [vmem:[%s342 + $0x6c] sm:$0xf]
        %v389 = vld [vmem:[%s342 + $0x70] sm:$0xf]
        %v390 = vld [vmem:[%s342 + $0x74] sm:$0xf]
        %v391 = vld [vmem:[%s342 + $0x78] sm:$0xf]
        %v392 = vld [vmem:[%s342 + $0x7c] sm:$0xf]
        %s393 = sshra.s32 %s360, 3
        %s394 = sand.u32 %s360, 7
        %s395 = smul.addr %s393, 4
        %s396 = scalar_lea.vmem %s342, %s395
        %v397 = vld [vmem:[%s396] sm:$0xf]
        %v398 = vld [vmem:[%s396 + $0x4] sm:$0xf]
        %v399 = vld [vmem:[%s396 + $0x8] sm:$0xf]
        %v400 = vld [vmem:[%s396 + $0xc] sm:$0xf]
        %v401 = vld [vmem:[%s396 + $0x10] sm:$0xf]
        %v402 = vld [vmem:[%s396 + $0x14] sm:$0xf]
        %v403 = vld [vmem:[%s396 + $0x18] sm:$0xf]
        %v404 = vld [vmem:[%s396 + $0x1c] sm:$0xf]
        %v405 = vld [vmem:[%s396 + $0x20] sm:$0xf]
        %v406 = vld [vmem:[%s396 + $0x24] sm:$0xf]
        %v407 = vld [vmem:[%s396 + $0x28] sm:$0xf]
        %v408 = vld [vmem:[%s396 + $0x2c] sm:$0xf]
        %v409 = vld [vmem:[%s396 + $0x30] sm:$0xf]
        %v410 = vld [vmem:[%s396 + $0x34] sm:$0xf]
        %v411 = vld [vmem:[%s396 + $0x38] sm:$0xf]
        %v412 = vld [vmem:[%s396 + $0x3c] sm:$0xf]
        %v413 = vld [vmem:[%s396 + $0x40] sm:$0xf]
        %v414 = vld [vmem:[%s396 + $0x44] sm:$0xf]
        %v415 = vld [vmem:[%s396 + $0x48] sm:$0xf]
        %v416 = vld [vmem:[%s396 + $0x4c] sm:$0xf]
        %v417 = vld [vmem:[%s396 + $0x50] sm:$0xf]
        %v418 = vld [vmem:[%s396 + $0x54] sm:$0xf]
        %v419 = vld [vmem:[%s396 + $0x58] sm:$0xf]
        %v420 = vld [vmem:[%s396 + $0x5c] sm:$0xf]
        %v421 = vld [vmem:[%s396 + $0x60] sm:$0xf]
        %v422 = vld [vmem:[%s396 + $0x64] sm:$0xf]
        %v423 = vld [vmem:[%s396 + $0x68] sm:$0xf]
        %v424 = vld [vmem:[%s396 + $0x6c] sm:$0xf]
        %v425 = vld [vmem:[%s396 + $0x70] sm:$0xf]
        %v426 = vld [vmem:[%s396 + $0x74] sm:$0xf]
        %v427 = vld [vmem:[%s396 + $0x78] sm:$0xf]
        %v428 = vld [vmem:[%s396 + $0x7c] sm:$0xf]
        %v429 = vld [vmem:[%s3] sm:$0xf]
        %v430 = vld [vmem:[%s3 + $0x4] sm:$0xf]
        %v431 = vld [vmem:[%s3 + $0x8] sm:$0xf]
        %v432 = vld [vmem:[%s3 + $0xc] sm:$0xf]
        %v465 = vunpack.c.l.b16 %v397
        %v466 = vunpack.c.l.b16 %v398
        %v467 = vunpack.c.l.b16 %v399
        %v468 = vunpack.c.l.b16 %v400
        %v469 = vunpack.c.l.b16 %v401
        %v470 = vunpack.c.l.b16 %v402
        %v471 = vunpack.c.l.b16 %v403
        %v472 = vunpack.c.l.b16 %v404
        %v473 = vunpack.c.l.b16 %v405
        %v474 = vunpack.c.l.b16 %v406
        %v475 = vunpack.c.l.b16 %v407
        %v476 = vunpack.c.l.b16 %v408
        %v477 = vunpack.c.l.b16 %v409
        %v478 = vunpack.c.l.b16 %v410
        %v479 = vunpack.c.l.b16 %v411
        %v480 = vunpack.c.l.b16 %v412
        %v481 = vunpack.c.l.b16 %v413
        %v482 = vunpack.c.l.b16 %v414
        %v483 = vunpack.c.l.b16 %v415
        %v484 = vunpack.c.l.b16 %v416
        %v485 = vunpack.c.l.b16 %v417
        %v486 = vunpack.c.l.b16 %v418
        %v487 = vunpack.c.l.b16 %v419
        %v488 = vunpack.c.l.b16 %v420
        %v489 = vunpack.c.l.b16 %v421
        %v490 = vunpack.c.l.b16 %v422
        %v491 = vunpack.c.l.b16 %v423
        %v492 = vunpack.c.l.b16 %v424
        %v493 = vunpack.c.l.b16 %v425
        %v494 = vunpack.c.l.b16 %v426
        %v495 = vunpack.c.l.b16 %v427
        %v496 = vunpack.c.l.b16 %v428
        %v497 = vpack.c.b16 %v466, %v465
        %v498 = vpack.c.b16 %v468, %v467
        %v499 = vpack.c.b16 %v470, %v469
        %v500 = vpack.c.b16 %v472, %v471
        %v501 = vpack.c.b16 %v474, %v473
        %v502 = vpack.c.b16 %v476, %v475
        %v503 = vpack.c.b16 %v478, %v477
        %v504 = vpack.c.b16 %v480, %v479
        %v505 = vpack.c.b16 %v482, %v481
        %v506 = vpack.c.b16 %v484, %v483
        %v507 = vpack.c.b16 %v486, %v485
        %v508 = vpack.c.b16 %v488, %v487
        %v509 = vpack.c.b16 %v490, %v489
        %v510 = vpack.c.b16 %v492, %v491
        %v511 = vpack.c.b16 %v494, %v493
        %v512 = vpack.c.b16 %v496, %v495
        %v517 = vunpack.c.l.b16 %v429
        %v518 = vunpack.c.l.b16 %v430
        %v519 = vunpack.c.l.b16 %v431
        %v520 = vunpack.c.l.b16 %v432
        %v521 = vpack.c.b16 %v518, %v517
        %v522 = vpack.c.b16 %v520, %v519
        %vm525 = vcmask 261120
        %v527 = vsel %vm525, %v497, 0
        %v530 = vsel %vm525, %v498, 0
        %v533 = vsel %vm525, %v499, 0
        %v536 = vsel %vm525, %v500, 0
        %v539 = vsel %vm525, %v501, 0
        %v542 = vsel %vm525, %v502, 0
        %v545 = vsel %vm525, %v503, 0
        %v548 = vsel %vm525, %v504, 0
        %v551 = vsel %vm525, %v505, 0
        %v554 = vsel %vm525, %v506, 0
        %v557 = vsel %vm525, %v507, 0
        %v560 = vsel %vm525, %v508, 0
        %v563 = vsel %vm525, %v509, 0
        %v566 = vsel %vm525, %v510, 0
        %v569 = vsel %vm525, %v511, 0
        %v572 = vsel %vm525, %v512, 0
        %574 = vmatprep.subr.bf16.mxu0 0
        %575 = vmatpush1.bf16.msra.mxu0 %v521
        %576 = vmatprep.subr.bf16.mxu0 0
        %577 = vmatpush1.bf16.msra.mxu0 %v522
        %578 = vmatprep.subr.bf16.mxu0 0
        %579 = vmatpush1.bf16.msra.mxu0 0
        %580 = vmatprep.subr.bf16.mxu0 0
        %581 = vmatpush1.bf16.msra.mxu0 0
        %582 = vmatprep.subr.bf16.mxu0 0
        %583 = vmatpush1.bf16.msra.mxu0 0
        %584 = vmatprep.subr.bf16.mxu0 0
        %585 = vmatpush1.bf16.msra.mxu0 0
        %586 = vmatprep.subr.bf16.mxu0 0
        %587 = vmatpush1.bf16.msra.mxu0 0
        %588 = vmatprep.subr.bf16.mxu0 0
        %589 = vmatpush1.bf16.msra.mxu0 0
        %590 = vmatprep.subr.bf16.mxu0 0
        %591 = vmatpush1.bf16.msra.mxu0 0
        %592 = vmatprep.subr.bf16.mxu0 0
        %593 = vmatpush1.bf16.msra.mxu0 0
        %594 = vmatprep.subr.bf16.mxu0 0
        %595 = vmatpush1.bf16.msra.mxu0 0
        %596 = vmatprep.subr.bf16.mxu0 0
        %597 = vmatpush1.bf16.msra.mxu0 0
        %598 = vmatprep.subr.bf16.mxu0 0
        %599 = vmatpush1.bf16.msra.mxu0 0
        %600 = vmatprep.subr.bf16.mxu0 0
        %601 = vmatpush1.bf16.msra.mxu0 0
        %602 = vmatprep.subr.bf16.mxu0 0
        %603 = vmatpush1.bf16.msra.mxu0 0
        %604 = vmatprep.subr.bf16.mxu0 0
        %605 = vmatpush1.bf16.msra.mxu0 0
        %606 = vmatprep.mubr.bf16.mxu0 0
        %607 = vmatmul.mubr.bf16.gmra.mrb[0].mxu0 %v527
        %v608 = vpop.f32.mrb[0].mxu0
        %v609 = vadd.f32 0.0, %v608
        %v610 = vpop.f32.mrb[0].mxu0
        %v611 = vpop.f32.mrb[0].mxu0
        %v612 = vadd.f32 0.0, %v611
        %v613 = vpop.f32.mrb[0].mxu0
        %614 = vmatprep.mubr.bf16.mxu0 0
        %615 = vmatmul.mubr.bf16.gmra.mrb[0].mxu0 %v530
        %v616 = vpop.f32.mrb[0].mxu0
        %v617 = vadd.f32 0.0, %v616
        %v618 = vpop.f32.mrb[0].mxu0
        %v619 = vpop.f32.mrb[0].mxu0
        %v620 = vadd.f32 0.0, %v619
        %v621 = vpop.f32.mrb[0].mxu0
        %622 = vmatprep.mubr.bf16.mxu0 0
        %623 = vmatmul.mubr.bf16.gmra.mrb[0].mxu0 %v533
        %v624 = vpop.f32.mrb[0].mxu0
        %v625 = vadd.f32 0.0, %v624
        %v626 = vpop.f32.mrb[0].mxu0
        %v627 = vpop.f32.mrb[0].mxu0
        %v628 = vadd.f32 0.0, %v627
        %v629 = vpop.f32.mrb[0].mxu0
        %630 = vmatprep.mubr.bf16.mxu0 0
        %631 = vmatmul.mubr.bf16.gmra.mrb[0].mxu0 %v536
        %v632 = vpop.f32.mrb[0].mxu0
        %v633 = vadd.f32 0.0, %v632
        %v634 = vpop.f32.mrb[0].mxu0
        %v635 = vpop.f32.mrb[0].mxu0
        %v636 = vadd.f32 0.0, %v635
        %v637 = vpop.f32.mrb[0].mxu0
        %638 = vmatprep.mubr.bf16.mxu0 0
        %639 = vmatmul.mubr.bf16.gmra.mrb[0].mxu0 %v539
        %v640 = vpop.f32.mrb[0].mxu0
        %v641 = vadd.f32 0.0, %v640
        %v642 = vpop.f32.mrb[0].mxu0
        %v643 = vpop.f32.mrb[0].mxu0
        %v644 = vadd.f32 0.0, %v643
        %v645 = vpop.f32.mrb[0].mxu0
        %646 = vmatprep.mubr.bf16.mxu0 0
        %647 = vmatmul.mubr.bf16.gmra.mrb[0].mxu0 %v542
        %v648 = vpop.f32.mrb[0].mxu0
        %v649 = vadd.f32 0.0, %v648
        %v650 = vpop.f32.mrb[0].mxu0
        %v651 = vpop.f32.mrb[0].mxu0
        %v652 = vadd.f32 0.0, %v651
        %v653 = vpop.f32.mrb[0].mxu0
        %654 = vmatprep.mubr.bf16.mxu0 0
        %655 = vmatmul.mubr.bf16.gmra.mrb[0].mxu0 %v545
        %v656 = vpop.f32.mrb[0].mxu0
        %v657 = vadd.f32 0.0, %v656
        %v658 = vpop.f32.mrb[0].mxu0
        %v659 = vpop.f32.mrb[0].mxu0
        %v660 = vadd.f32 0.0, %v659
        %v661 = vpop.f32.mrb[0].mxu0
        %662 = vmatprep.mubr.bf16.mxu0 0
        %663 = vmatmul.mubr.bf16.gmra.mrb[0].mxu0 %v548
        %v664 = vpop.f32.mrb[0].mxu0
        %v665 = vadd.f32 0.0, %v664
        %v666 = vpop.f32.mrb[0].mxu0
        %v667 = vpop.f32.mrb[0].mxu0
        %v668 = vadd.f32 0.0, %v667
        %v669 = vpop.f32.mrb[0].mxu0
        %670 = vmatprep.mubr.bf16.mxu0 0
        %671 = vmatmul.mubr.bf16.gmra.mrb[0].mxu0 %v551
        %v672 = vpop.f32.mrb[0].mxu0
        %v673 = vadd.f32 0.0, %v672
        %v674 = vpop.f32.mrb[0].mxu0
        %v675 = vpop.f32.mrb[0].mxu0
        %v676 = vadd.f32 0.0, %v675
        %v677 = vpop.f32.mrb[0].mxu0
        %678 = vmatprep.mubr.bf16.mxu0 0
        %679 = vmatmul.mubr.bf16.gmra.mrb[0].mxu0 %v554
        %v680 = vpop.f32.mrb[0].mxu0
        %v681 = vadd.f32 0.0, %v680
        %v682 = vpop.f32.mrb[0].mxu0
        %v683 = vpop.f32.mrb[0].mxu0
        %v684 = vadd.f32 0.0, %v683
        %v685 = vpop.f32.mrb[0].mxu0
        %686 = vmatprep.mubr.bf16.mxu0 0
        %687 = vmatmul.mubr.bf16.gmra.mrb[0].mxu0 %v557
        %v688 = vpop.f32.mrb[0].mxu0
        %v689 = vadd.f32 0.0, %v688
        %v690 = vpop.f32.mrb[0].mxu0
        %v691 = vpop.f32.mrb[0].mxu0
        %v692 = vadd.f32 0.0, %v691
        %v693 = vpop.f32.mrb[0].mxu0
        %694 = vmatprep.mubr.bf16.mxu0 0
        %695 = vmatmul.mubr.bf16.gmra.mrb[0].mxu0 %v560
        %v696 = vpop.f32.mrb[0].mxu0
        %v697 = vadd.f32 0.0, %v696
        %v698 = vpop.f32.mrb[0].mxu0
        %v699 = vpop.f32.mrb[0].mxu0
        %v700 = vadd.f32 0.0, %v699
        %v701 = vpop.f32.mrb[0].mxu0
        %702 = vmatprep.mubr.bf16.mxu0 0
        %703 = vmatmul.mubr.bf16.gmra.mrb[0].mxu0 %v563
        %v704 = vpop.f32.mrb[0].mxu0
        %v705 = vadd.f32 0.0, %v704
        %v706 = vpop.f32.mrb[0].mxu0
        %v707 = vpop.f32.mrb[0].mxu0
        %v708 = vadd.f32 0.0, %v707
        %v709 = vpop.f32.mrb[0].mxu0
        %710 = vmatprep.mubr.bf16.mxu0 0
        %711 = vmatmul.mubr.bf16.gmra.mrb[0].mxu0 %v566
        %v712 = vpop.f32.mrb[0].mxu0
        %v713 = vadd.f32 0.0, %v712
        %v714 = vpop.f32.mrb[0].mxu0
        %v715 = vpop.f32.mrb[0].mxu0
        %v716 = vadd.f32 0.0, %v715
        %v717 = vpop.f32.mrb[0].mxu0
        %718 = vmatprep.mubr.bf16.mxu0 0
        %719 = vmatmul.mubr.bf16.gmra.mrb[0].mxu0 %v569
        %v720 = vpop.f32.mrb[0].mxu0
        %v721 = vadd.f32 0.0, %v720
        %v722 = vpop.f32.mrb[0].mxu0
        %v723 = vpop.f32.mrb[0].mxu0
        %v724 = vadd.f32 0.0, %v723
        %v725 = vpop.f32.mrb[0].mxu0
        %726 = vmatprep.mubr.bf16.mxu0 0
        %727 = vmatmul.mubr.bf16.gmra.mrb[0].mxu0 %v572
        %v728 = vpop.f32.mrb[0].mxu0
        %v729 = vadd.f32 0.0, %v728
        %v730 = vpop.f32.mrb[0].mxu0
        %v731 = vpop.f32.mrb[0].mxu0
        %v732 = vadd.f32 0.0, %v731
        %v733 = vpop.f32.mrb[0].mxu0
        %734 = vdwg.mxu0
        %v735 = vpack.c.bf16 %v612, %v609
        %v736 = vpack.c.bf16 %v620, %v617
        %v737 = vpack.c.bf16 %v628, %v625
        %v738 = vpack.c.bf16 %v636, %v633
        %v739 = vpack.c.bf16 %v644, %v641
        %v740 = vpack.c.bf16 %v652, %v649
        %v741 = vpack.c.bf16 %v660, %v657
        %v742 = vpack.c.bf16 %v668, %v665
        %v743 = vpack.c.bf16 %v676, %v673
        %v744 = vpack.c.bf16 %v684, %v681
        %v745 = vpack.c.bf16 %v692, %v689
        %v746 = vpack.c.bf16 %v700, %v697
        %v747 = vpack.c.bf16 %v708, %v705
        %v748 = vpack.c.bf16 %v716, %v713
        %v749 = vpack.c.bf16 %v724, %v721
        %v750 = vpack.c.bf16 %v732, %v729
        %v751 = vld [vmem:[%s356] sm:$0x3]
        %v753 = vlaneseq
        %v754 = vshrl.u32 %v753, 7
        %v755 = vsub.s32 0, %v754
        %v756 = vrot.slane %v751, %v755
        %v757 = vlaneseq
        %v758 = vshrl.u32 %v757, 7
        %v759 = vsub.s32 1, %v758
        %v760 = vrot.slane %v751, %v759
        %v795 = vunpack.c.l.b16 %v361
        %v796 = vunpack.c.l.b16 %v362
        %v797 = vunpack.c.l.b16 %v363
        %v798 = vunpack.c.l.b16 %v364
        %v799 = vunpack.c.l.b16 %v365
        %v800 = vunpack.c.l.b16 %v366
        %v801 = vunpack.c.l.b16 %v367
        %v802 = vunpack.c.l.b16 %v368
        %v803 = vunpack.c.l.b16 %v369
        %v804 = vunpack.c.l.b16 %v370
        %v805 = vunpack.c.l.b16 %v371
        %v806 = vunpack.c.l.b16 %v372
        %v807 = vunpack.c.l.b16 %v373
        %v808 = vunpack.c.l.b16 %v374
        %v809 = vunpack.c.l.b16 %v375
        %v810 = vunpack.c.l.b16 %v376
        %v811 = vunpack.c.l.b16 %v377
        %v812 = vunpack.c.l.b16 %v378
        %v813 = vunpack.c.l.b16 %v379
        %v814 = vunpack.c.l.b16 %v380
        %v815 = vunpack.c.l.b16 %v381
        %v816 = vunpack.c.l.b16 %v382
        %v817 = vunpack.c.l.b16 %v383
        %v818 = vunpack.c.l.b16 %v384
        %v819 = vunpack.c.l.b16 %v385
        %v820 = vunpack.c.l.b16 %v386
        %v821 = vunpack.c.l.b16 %v387
        %v822 = vunpack.c.l.b16 %v388
        %v823 = vunpack.c.l.b16 %v389
        %v824 = vunpack.c.l.b16 %v390
        %v825 = vunpack.c.l.b16 %v391
        %v826 = vunpack.c.l.b16 %v392
        %v827 = vpack.c.b16 %v796, %v795
        %v828 = vpack.c.b16 %v798, %v797
        %v829 = vpack.c.b16 %v800, %v799
        %v830 = vpack.c.b16 %v802, %v801
        %v831 = vpack.c.b16 %v804, %v803
        %v832 = vpack.c.b16 %v806, %v805
        %v833 = vpack.c.b16 %v808, %v807
        %v834 = vpack.c.b16 %v810, %v809
        %v835 = vpack.c.b16 %v812, %v811
        %v836 = vpack.c.b16 %v814, %v813
        %v837 = vpack.c.b16 %v816, %v815
        %v838 = vpack.c.b16 %v818, %v817
        %v839 = vpack.c.b16 %v820, %v819
        %v840 = vpack.c.b16 %v822, %v821
        %v841 = vpack.c.b16 %v824, %v823
        %v842 = vpack.c.b16 %v826, %v825
        %v844 = vsel %vm525, %v735, 0
        %v847 = vsel %vm525, %v736, 0
        %v850 = vsel %vm525, %v737, 0
        %v853 = vsel %vm525, %v738, 0
        %v856 = vsel %vm525, %v739, 0
        %v859 = vsel %vm525, %v740, 0
        %v862 = vsel %vm525, %v741, 0
        %v865 = vsel %vm525, %v742, 0
        %v868 = vsel %vm525, %v743, 0
        %v871 = vsel %vm525, %v744, 0
        %v874 = vsel %vm525, %v745, 0
        %v877 = vsel %vm525, %v746, 0
        %v880 = vsel %vm525, %v747, 0
        %v883 = vsel %vm525, %v748, 0
        %v886 = vsel %vm525, %v749, 0
        %v889 = vsel %vm525, %v750, 0
        %v892 = vsel %vm525, %v827, 0
        %v895 = vsel %vm525, %v828, 0
        %v898 = vsel %vm525, %v829, 0
        %v901 = vsel %vm525, %v830, 0
        %v904 = vsel %vm525, %v831, 0
        %v907 = vsel %vm525, %v832, 0
        %v910 = vsel %vm525, %v833, 0
        %v913 = vsel %vm525, %v834, 0
        %v916 = vsel %vm525, %v835, 0
        %v919 = vsel %vm525, %v836, 0
        %v922 = vsel %vm525, %v837, 0
        %v925 = vsel %vm525, %v838, 0
        %v928 = vsel %vm525, %v839, 0
        %v931 = vsel %vm525, %v840, 0
        %v934 = vsel %vm525, %v841, 0
        %v937 = vsel %vm525, %v842, 0
        %939 = vmatprep.subr.bf16.mxu0 0
        %940 = vmatpush1.bf16.xpose.msra.mxu0 %v892
        %941 = vmatprep.subr.bf16.mxu0 0
        %942 = vmatpush1.bf16.xpose.msra.mxu0 %v895
        %943 = vmatprep.subr.bf16.mxu0 0
        %944 = vmatpush1.bf16.xpose.msra.mxu0 %v898
        %945 = vmatprep.subr.bf16.mxu0 0
        %946 = vmatpush1.bf16.xpose.msra.mxu0 %v901
        %947 = vmatprep.subr.bf16.mxu0 0
        %948 = vmatpush1.bf16.xpose.msra.mxu0 %v904
        %949 = vmatprep.subr.bf16.mxu0 0
        %950 = vmatpush1.bf16.xpose.msra.mxu0 %v907
        %951 = vmatprep.subr.bf16.mxu0 0
        %952 = vmatpush1.bf16.xpose.msra.mxu0 %v910
        %953 = vmatprep.subr.bf16.mxu0 0
        %954 = vmatpush1.bf16.xpose.msra.mxu0 %v913
        %955 = vmatprep.subr.bf16.mxu0 0
        %956 = vmatpush1.bf16.xpose.msra.mxu0 %v916
        %957 = vmatprep.subr.bf16.mxu0 0
        %958 = vmatpush1.bf16.xpose.msra.mxu0 %v919
        %959 = vmatprep.subr.bf16.mxu0 0
        %960 = vmatpush1.bf16.xpose.msra.mxu0 %v922
        %961 = vmatprep.subr.bf16.mxu0 0
        %962 = vmatpush1.bf16.xpose.msra.mxu0 %v925
        %963 = vmatprep.subr.bf16.mxu0 0
        %964 = vmatpush1.bf16.xpose.msra.mxu0 %v928
        %965 = vmatprep.subr.bf16.mxu0 0
        %966 = vmatpush1.bf16.xpose.msra.mxu0 %v931
        %967 = vmatprep.subr.bf16.mxu0 0
        %968 = vmatpush1.bf16.xpose.msra.mxu0 %v934
        %969 = vmatprep.subr.bf16.mxu0 0
        %970 = vmatpush1.bf16.xpose.msra.mxu0 %v937
        %971 = vmatprep.mubr.bf16.mxu0 0
        %972 = vmatmul.mubr.bf16.gmra.mrb[0].mxu0 %v844
        %v973 = vpop.f32.mrb[0].mxu0
        %v974 = vadd.f32 %v756, %v973
        %v975 = vpop.f32.mrb[0].mxu0
        %v976 = vadd.f32 %v760, %v975
        %v977 = vpop.f32.mrb[0].mxu0
        %v978 = vadd.f32 %v756, %v977
        %v979 = vpop.f32.mrb[0].mxu0
        %v980 = vadd.f32 %v760, %v979
        %981 = vmatprep.mubr.bf16.mxu0 0
        %982 = vmatmul.mubr.bf16.gmra.mrb[0].mxu0 %v847
        %v983 = vpop.f32.mrb[0].mxu0
        %v984 = vadd.f32 %v756, %v983
        %v985 = vpop.f32.mrb[0].mxu0
        %v986 = vadd.f32 %v760, %v985
        %v987 = vpop.f32.mrb[0].mxu0
        %v988 = vadd.f32 %v756, %v987
        %v989 = vpop.f32.mrb[0].mxu0
        %v990 = vadd.f32 %v760, %v989
        %991 = vmatprep.mubr.bf16.mxu0 0
        %992 = vmatmul.mubr.bf16.gmra.mrb[0].mxu0 %v850
        %v993 = vpop.f32.mrb[0].mxu0
        %v994 = vadd.f32 %v756, %v993
        %v995 = vpop.f32.mrb[0].mxu0
        %v996 = vadd.f32 %v760, %v995
        %v997 = vpop.f32.mrb[0].mxu0
        %v998 = vadd.f32 %v756, %v997
        %v999 = vpop.f32.mrb[0].mxu0
        %v1000 = vadd.f32 %v760, %v999
        %1001 = vmatprep.mubr.bf16.mxu0 0
        %1002 = vmatmul.mubr.bf16.gmra.mrb[0].mxu0 %v853
        %v1003 = vpop.f32.mrb[0].mxu0
        %v1004 = vadd.f32 %v756, %v1003
        %v1005 = vpop.f32.mrb[0].mxu0
        %v1006 = vadd.f32 %v760, %v1005
        %v1007 = vpop.f32.mrb[0].mxu0
        %v1008 = vadd.f32 %v756, %v1007
        %v1009 = vpop.f32.mrb[0].mxu0
        %v1010 = vadd.f32 %v760, %v1009
        %1011 = vmatprep.mubr.bf16.mxu0 0
        %1012 = vmatmul.mubr.bf16.gmra.mrb[0].mxu0 %v856
        %v1013 = vpop.f32.mrb[0].mxu0
        %v1014 = vadd.f32 %v756, %v1013
        %v1015 = vpop.f32.mrb[0].mxu0
        %v1016 = vadd.f32 %v760, %v1015
        %v1017 = vpop.f32.mrb[0].mxu0
        %v1018 = vadd.f32 %v756, %v1017
        %v1019 = vpop.f32.mrb[0].mxu0
        %v1020 = vadd.f32 %v760, %v1019
        %1021 = vmatprep.mubr.bf16.mxu0 0
        %1022 = vmatmul.mubr.bf16.gmra.mrb[0].mxu0 %v859
        %v1023 = vpop.f32.mrb[0].mxu0
        %v1024 = vadd.f32 %v756, %v1023
        %v1025 = vpop.f32.mrb[0].mxu0
        %v1026 = vadd.f32 %v760, %v1025
        %v1027 = vpop.f32.mrb[0].mxu0
        %v1028 = vadd.f32 %v756, %v1027
        %v1029 = vpop.f32.mrb[0].mxu0
        %v1030 = vadd.f32 %v760, %v1029
        %1031 = vmatprep.mubr.bf16.mxu0 0
        %1032 = vmatmul.mubr.bf16.gmra.mrb[0].mxu0 %v862
        %v1033 = vpop.f32.mrb[0].mxu0
        %v1034 = vadd.f32 %v756, %v1033
        %v1035 = vpop.f32.mrb[0].mxu0
        %v1036 = vadd.f32 %v760, %v1035
        %v1037 = vpop.f32.mrb[0].mxu0
        %v1038 = vadd.f32 %v756, %v1037
        %v1039 = vpop.f32.mrb[0].mxu0
        %v1040 = vadd.f32 %v760, %v1039
        %1041 = vmatprep.mubr.bf16.mxu0 0
        %1042 = vmatmul.mubr.bf16.gmra.mrb[0].mxu0 %v865
        %v1043 = vpop.f32.mrb[0].mxu0
        %v1044 = vadd.f32 %v756, %v1043
        %v1045 = vpop.f32.mrb[0].mxu0
        %v1046 = vadd.f32 %v760, %v1045
        %v1047 = vpop.f32.mrb[0].mxu0
        %v1048 = vadd.f32 %v756, %v1047
        %v1049 = vpop.f32.mrb[0].mxu0
        %v1050 = vadd.f32 %v760, %v1049
        %1051 = vmatprep.mubr.bf16.mxu0 0
        %1052 = vmatmul.mubr.bf16.gmra.mrb[0].mxu0 %v868
        %v1053 = vpop.f32.mrb[0].mxu0
        %v1054 = vadd.f32 %v756, %v1053
        %v1055 = vpop.f32.mrb[0].mxu0
        %v1056 = vadd.f32 %v760, %v1055
        %v1057 = vpop.f32.mrb[0].mxu0
        %v1058 = vadd.f32 %v756, %v1057
        %v1059 = vpop.f32.mrb[0].mxu0
        %v1060 = vadd.f32 %v760, %v1059
        %1061 = vmatprep.mubr.bf16.mxu0 0
        %1062 = vmatmul.mubr.bf16.gmra.mrb[0].mxu0 %v871
        %v1063 = vpop.f32.mrb[0].mxu0
        %v1064 = vadd.f32 %v756, %v1063
        %v1065 = vpop.f32.mrb[0].mxu0
        %v1066 = vadd.f32 %v760, %v1065
        %v1067 = vpop.f32.mrb[0].mxu0
        %v1068 = vadd.f32 %v756, %v1067
        %v1069 = vpop.f32.mrb[0].mxu0
        %v1070 = vadd.f32 %v760, %v1069
        %1071 = vmatprep.mubr.bf16.mxu0 0
        %1072 = vmatmul.mubr.bf16.gmra.mrb[0].mxu0 %v874
        %v1073 = vpop.f32.mrb[0].mxu0
        %v1074 = vadd.f32 %v756, %v1073
        %v1075 = vpop.f32.mrb[0].mxu0
        %v1076 = vadd.f32 %v760, %v1075
        %v1077 = vpop.f32.mrb[0].mxu0
        %v1078 = vadd.f32 %v756, %v1077
        %v1079 = vpop.f32.mrb[0].mxu0
        %v1080 = vadd.f32 %v760, %v1079
        %1081 = vmatprep.mubr.bf16.mxu0 0
        %1082 = vmatmul.mubr.bf16.gmra.mrb[0].mxu0 %v877
        %v1083 = vpop.f32.mrb[0].mxu0
        %v1084 = vadd.f32 %v756, %v1083
        %v1085 = vpop.f32.mrb[0].mxu0
        %v1086 = vadd.f32 %v760, %v1085
        %v1087 = vpop.f32.mrb[0].mxu0
        %v1088 = vadd.f32 %v756, %v1087
        %v1089 = vpop.f32.mrb[0].mxu0
        %v1090 = vadd.f32 %v760, %v1089
        %1091 = vmatprep.mubr.bf16.mxu0 0
        %1092 = vmatmul.mubr.bf16.gmra.mrb[0].mxu0 %v880
        %v1093 = vpop.f32.mrb[0].mxu0
        %v1094 = vadd.f32 %v756, %v1093
        %v1095 = vpop.f32.mrb[0].mxu0
        %v1096 = vadd.f32 %v760, %v1095
        %v1097 = vpop.f32.mrb[0].mxu0
        %v1098 = vadd.f32 %v756, %v1097
        %v1099 = vpop.f32.mrb[0].mxu0
        %v1100 = vadd.f32 %v760, %v1099
        %1101 = vmatprep.mubr.bf16.mxu0 0
        %1102 = vmatmul.mubr.bf16.gmra.mrb[0].mxu0 %v883
        %v1103 = vpop.f32.mrb[0].mxu0
        %v1104 = vadd.f32 %v756, %v1103
        %v1105 = vpop.f32.mrb[0].mxu0
        %v1106 = vadd.f32 %v760, %v1105
        %v1107 = vpop.f32.mrb[0].mxu0
        %v1108 = vadd.f32 %v756, %v1107
        %v1109 = vpop.f32.mrb[0].mxu0
        %v1110 = vadd.f32 %v760, %v1109
        %1111 = vmatprep.mubr.bf16.mxu0 0
        %1112 = vmatmul.mubr.bf16.gmra.mrb[0].mxu0 %v886
        %v1113 = vpop.f32.mrb[0].mxu0
        %v1114 = vadd.f32 %v756, %v1113
        %v1115 = vpop.f32.mrb[0].mxu0
        %v1116 = vadd.f32 %v760, %v1115
        %v1117 = vpop.f32.mrb[0].mxu0
        %v1118 = vadd.f32 %v756, %v1117
        %v1119 = vpop.f32.mrb[0].mxu0
        %v1120 = vadd.f32 %v760, %v1119
        %1121 = vmatprep.mubr.bf16.mxu0 0
        %1122 = vmatmul.mubr.bf16.gmra.mrb[0].mxu0 %v889
        %v1123 = vpop.f32.mrb[0].mxu0
        %v1124 = vadd.f32 %v756, %v1123
        %v1125 = vpop.f32.mrb[0].mxu0
        %v1126 = vadd.f32 %v760, %v1125
        %v1127 = vpop.f32.mrb[0].mxu0
        %v1128 = vadd.f32 %v756, %v1127
        %v1129 = vpop.f32.mrb[0].mxu0
        %v1130 = vadd.f32 %v760, %v1129
        %1131 = vdwg.mxu0
        %v1132 = vmax.f32 %v974, %v976
        %1133 = vmax.xlane.f32.xlu0 %v1132
        %v1134 = vpop.xlane.xlu0 %1133
        %v1135 = vmax.f32 %v978, %v980
        %1136 = vmax.xlane.f32.xlu0 %v1135
        %v1137 = vpop.xlane.xlu0 %1136
        %v1138 = vmax.f32 %v984, %v986
        %1139 = vmax.xlane.f32.xlu0 %v1138
        %v1140 = vpop.xlane.xlu0 %1139
        %v1141 = vmax.f32 %v988, %v990
        %1142 = vmax.xlane.f32.xlu0 %v1141
        %v1143 = vpop.xlane.xlu0 %1142
        %v1144 = vmax.f32 %v994, %v996
        %1145 = vmax.xlane.f32.xlu0 %v1144
        %v1146 = vpop.xlane.xlu0 %1145
        %v1147 = vmax.f32 %v998, %v1000
        %1148 = vmax.xlane.f32.xlu0 %v1147
        %v1149 = vpop.xlane.xlu0 %1148
        %v1150 = vmax.f32 %v1004, %v1006
        %1151 = vmax.xlane.f32.xlu0 %v1150
        %v1152 = vpop.xlane.xlu0 %1151
        %v1153 = vmax.f32 %v1008, %v1010
        %1154 = vmax.xlane.f32.xlu0 %v1153
        %v1155 = vpop.xlane.xlu0 %1154
        %v1156 = vmax.f32 %v1014, %v1016
        %1157 = vmax.xlane.f32.xlu0 %v1156
        %v1158 = vpop.xlane.xlu0 %1157
        %v1159 = vmax.f32 %v1018, %v1020
        %1160 = vmax.xlane.f32.xlu0 %v1159
        %v1161 = vpop.xlane.xlu0 %1160
        %v1162 = vmax.f32 %v1024, %v1026
        %1163 = vmax.xlane.f32.xlu0 %v1162
        %v1164 = vpop.xlane.xlu0 %1163
        %v1165 = vmax.f32 %v1028, %v1030
        %1166 = vmax.xlane.f32.xlu0 %v1165
        %v1167 = vpop.xlane.xlu0 %1166
        %v1168 = vmax.f32 %v1034, %v1036
        %1169 = vmax.xlane.f32.xlu0 %v1168
        %v1170 = vpop.xlane.xlu0 %1169
        %v1171 = vmax.f32 %v1038, %v1040
        %1172 = vmax.xlane.f32.xlu0 %v1171
        %v1173 = vpop.xlane.xlu0 %1172
        %v1174 = vmax.f32 %v1044, %v1046
        %1175 = vmax.xlane.f32.xlu0 %v1174
        %v1176 = vpop.xlane.xlu0 %1175
        %v1177 = vmax.f32 %v1048, %v1050
        %1178 = vmax.xlane.f32.xlu0 %v1177
        %v1179 = vpop.xlane.xlu0 %1178
        %v1180 = vmax.f32 %v1054, %v1056
        %1181 = vmax.xlane.f32.xlu0 %v1180
        %v1182 = vpop.xlane.xlu0 %1181
        %v1183 = vmax.f32 %v1058, %v1060
        %1184 = vmax.xlane.f32.xlu0 %v1183
        %v1185 = vpop.xlane.xlu0 %1184
        %v1186 = vmax.f32 %v1064, %v1066
        %1187 = vmax.xlane.f32.xlu0 %v1186
        %v1188 = vpop.xlane.xlu0 %1187
        %v1189 = vmax.f32 %v1068, %v1070
        %1190 = vmax.xlane.f32.xlu0 %v1189
        %v1191 = vpop.xlane.xlu0 %1190
        %v1192 = vmax.f32 %v1074, %v1076
        %1193 = vmax.xlane.f32.xlu0 %v1192
        %v1194 = vpop.xlane.xlu0 %1193
        %v1195 = vmax.f32 %v1078, %v1080
        %1196 = vmax.xlane.f32.xlu0 %v1195
        %v1197 = vpop.xlane.xlu0 %1196
        %v1198 = vmax.f32 %v1084, %v1086
        %1199 = vmax.xlane.f32.xlu0 %v1198
        %v1200 = vpop.xlane.xlu0 %1199
        %v1201 = vmax.f32 %v1088, %v1090
        %1202 = vmax.xlane.f32.xlu0 %v1201
        %v1203 = vpop.xlane.xlu0 %1202
        %v1204 = vmax.f32 %v1094, %v1096
        %1205 = vmax.xlane.f32.xlu0 %v1204
        %v1206 = vpop.xlane.xlu0 %1205
        %v1207 = vmax.f32 %v1098, %v1100
        %1208 = vmax.xlane.f32.xlu0 %v1207
        %v1209 = vpop.xlane.xlu0 %1208
        %v1210 = vmax.f32 %v1104, %v1106
        %1211 = vmax.xlane.f32.xlu0 %v1210
        %v1212 = vpop.xlane.xlu0 %1211
        %v1213 = vmax.f32 %v1108, %v1110
        %1214 = vmax.xlane.f32.xlu0 %v1213
        %v1215 = vpop.xlane.xlu0 %1214
        %v1216 = vmax.f32 %v1114, %v1116
        %1217 = vmax.xlane.f32.xlu0 %v1216
        %v1218 = vpop.xlane.xlu0 %1217
        %v1219 = vmax.f32 %v1118, %v1120
        %1220 = vmax.xlane.f32.xlu0 %v1219
        %v1221 = vpop.xlane.xlu0 %1220
        %v1222 = vmax.f32 %v1124, %v1126
        %1223 = vmax.xlane.f32.xlu0 %v1222
        %v1224 = vpop.xlane.xlu0 %1223
        %v1225 = vmax.f32 %v1128, %v1130
        %1226 = vmax.xlane.f32.xlu0 %v1225
        %v1227 = vpop.xlane.xlu0 %1226
        %v1228 = vsub.f32 %v974, %v1134
        %v1229 = vsub.f32 %v976, %v1134
        %v1230 = vsub.f32 %v978, %v1137
        %v1231 = vsub.f32 %v980, %v1137
        %v1232 = vsub.f32 %v984, %v1140
        %v1233 = vsub.f32 %v986, %v1140
        %v1234 = vsub.f32 %v988, %v1143
        %v1235 = vsub.f32 %v990, %v1143
        %v1236 = vsub.f32 %v994, %v1146
        %v1237 = vsub.f32 %v996, %v1146
        %v1238 = vsub.f32 %v998, %v1149
        %v1239 = vsub.f32 %v1000, %v1149
        %v1240 = vsub.f32 %v1004, %v1152
        %v1241 = vsub.f32 %v1006, %v1152
        %v1242 = vsub.f32 %v1008, %v1155
        %v1243 = vsub.f32 %v1010, %v1155
        %v1244 = vsub.f32 %v1014, %v1158
        %v1245 = vsub.f32 %v1016, %v1158
        %v1246 = vsub.f32 %v1018, %v1161
        %v1247 = vsub.f32 %v1020, %v1161
        %v1248 = vsub.f32 %v1024, %v1164
        %v1249 = vsub.f32 %v1026, %v1164
        %v1250 = vsub.f32 %v1028, %v1167
        %v1251 = vsub.f32 %v1030, %v1167
        %v1252 = vsub.f32 %v1034, %v1170
        %v1253 = vsub.f32 %v1036, %v1170
        %v1254 = vsub.f32 %v1038, %v1173
        %v1255 = vsub.f32 %v1040, %v1173
        %v1256 = vsub.f32 %v1044, %v1176
        %v1257 = vsub.f32 %v1046, %v1176
        %v1258 = vsub.f32 %v1048, %v1179
        %v1259 = vsub.f32 %v1050, %v1179
        %v1260 = vsub.f32 %v1054, %v1182
        %v1261 = vsub.f32 %v1056, %v1182
        %v1262 = vsub.f32 %v1058, %v1185
        %v1263 = vsub.f32 %v1060, %v1185
        %v1264 = vsub.f32 %v1064, %v1188
        %v1265 = vsub.f32 %v1066, %v1188
        %v1266 = vsub.f32 %v1068, %v1191
        %v1267 = vsub.f32 %v1070, %v1191
        %v1268 = vsub.f32 %v1074, %v1194
        %v1269 = vsub.f32 %v1076, %v1194
        %v1270 = vsub.f32 %v1078, %v1197
        %v1271 = vsub.f32 %v1080, %v1197
        %v1272 = vsub.f32 %v1084, %v1200
        %v1273 = vsub.f32 %v1086, %v1200
        %v1274 = vsub.f32 %v1088, %v1203
        %v1275 = vsub.f32 %v1090, %v1203
        %v1276 = vsub.f32 %v1094, %v1206
        %v1277 = vsub.f32 %v1096, %v1206
        %v1278 = vsub.f32 %v1098, %v1209
        %v1279 = vsub.f32 %v1100, %v1209
        %v1280 = vsub.f32 %v1104, %v1212
        %v1281 = vsub.f32 %v1106, %v1212
        %v1282 = vsub.f32 %v1108, %v1215
        %v1283 = vsub.f32 %v1110, %v1215
        %v1284 = vsub.f32 %v1114, %v1218
        %v1285 = vsub.f32 %v1116, %v1218
        %v1286 = vsub.f32 %v1118, %v1221
        %v1287 = vsub.f32 %v1120, %v1221
        %v1288 = vsub.f32 %v1124, %v1224
        %v1289 = vsub.f32 %v1126, %v1224
        %v1290 = vsub.f32 %v1128, %v1227
        %v1291 = vsub.f32 %v1130, %v1227
        %v1292 = vmul.f32 %v1228, 1.442695
        %v1293 = vpow.pop %v1292
        %v1294 = vmul.f32 %v1229, 1.442695
        %v1295 = vpow.pop %v1294
        %v1296 = vmul.f32 %v1230, 1.442695
        %v1297 = vpow.pop %v1296
        %v1298 = vmul.f32 %v1231, 1.442695
        %v1299 = vpow.pop %v1298
        %v1300 = vmul.f32 %v1232, 1.442695
        %v1301 = vpow.pop %v1300
        %v1302 = vmul.f32 %v1233, 1.442695
        %v1303 = vpow.pop %v1302
        %v1304 = vmul.f32 %v1234, 1.442695
        %v1305 = vpow.pop %v1304
        %v1306 = vmul.f32 %v1235, 1.442695
        %v1307 = vpow.pop %v1306
        %v1308 = vmul.f32 %v1236, 1.442695
        %v1309 = vpow.pop %v1308
        %v1310 = vmul.f32 %v1237, 1.442695
        %v1311 = vpow.pop %v1310
        %v1312 = vmul.f32 %v1238, 1.442695
        %v1313 = vpow.pop %v1312
        %v1314 = vmul.f32 %v1239, 1.442695
        %v1315 = vpow.pop %v1314
        %v1316 = vmul.f32 %v1240, 1.442695
        %v1317 = vpow.pop %v1316
        %v1318 = vmul.f32 %v1241, 1.442695
        %v1319 = vpow.pop %v1318
        %v1320 = vmul.f32 %v1242, 1.442695
        %v1321 = vpow.pop %v1320
        %v1322 = vmul.f32 %v1243, 1.442695
        %v1323 = vpow.pop %v1322
        %v1324 = vmul.f32 %v1244, 1.442695
        %v1325 = vpow.pop %v1324
        %v1326 = vmul.f32 %v1245, 1.442695
        %v1327 = vpow.pop %v1326
        %v1328 = vmul.f32 %v1246, 1.442695
        %v1329 = vpow.pop %v1328
        %v1330 = vmul.f32 %v1247, 1.442695
        %v1331 = vpow.pop %v1330
        %v1332 = vmul.f32 %v1248, 1.442695
        %v1333 = vpow.pop %v1332
        %v1334 = vmul.f32 %v1249, 1.442695
        %v1335 = vpow.pop %v1334
        %v1336 = vmul.f32 %v1250, 1.442695
        %v1337 = vpow.pop %v1336
        %v1338 = vmul.f32 %v1251, 1.442695
        %v1339 = vpow.pop %v1338
        %v1340 = vmul.f32 %v1252, 1.442695
        %v1341 = vpow.pop %v1340
        %v1342 = vmul.f32 %v1253, 1.442695
        %v1343 = vpow.pop %v1342
        %v1344 = vmul.f32 %v1254, 1.442695
        %v1345 = vpow.pop %v1344
        %v1346 = vmul.f32 %v1255, 1.442695
        %v1347 = vpow.pop %v1346
        %v1348 = vmul.f32 %v1256, 1.442695
        %v1349 = vpow.pop %v1348
        %v1350 = vmul.f32 %v1257, 1.442695
        %v1351 = vpow.pop %v1350
        %v1352 = vmul.f32 %v1258, 1.442695
        %v1353 = vpow.pop %v1352
        %v1354 = vmul.f32 %v1259, 1.442695
        %v1355 = vpow.pop %v1354
        %v1356 = vmul.f32 %v1260, 1.442695
        %v1357 = vpow.pop %v1356
        %v1358 = vmul.f32 %v1261, 1.442695
        %v1359 = vpow.pop %v1358
        %v1360 = vmul.f32 %v1262, 1.442695
        %v1361 = vpow.pop %v1360
        %v1362 = vmul.f32 %v1263, 1.442695
        %v1363 = vpow.pop %v1362
        %v1364 = vmul.f32 %v1264, 1.442695
        %v1365 = vpow.pop %v1364
        %v1366 = vmul.f32 %v1265, 1.442695
        %v1367 = vpow.pop %v1366
        %v1368 = vmul.f32 %v1266, 1.442695
        %v1369 = vpow.pop %v1368
        %v1370 = vmul.f32 %v1267, 1.442695
        %v1371 = vpow.pop %v1370
        %v1372 = vmul.f32 %v1268, 1.442695
        %v1373 = vpow.pop %v1372
        %v1374 = vmul.f32 %v1269, 1.442695
        %v1375 = vpow.pop %v1374
        %v1376 = vmul.f32 %v1270, 1.442695
        %v1377 = vpow.pop %v1376
        %v1378 = vmul.f32 %v1271, 1.442695
        %v1379 = vpow.pop %v1378
        %v1380 = vmul.f32 %v1272, 1.442695
        %v1381 = vpow.pop %v1380
        %v1382 = vmul.f32 %v1273, 1.442695
        %v1383 = vpow.pop %v1382
        %v1384 = vmul.f32 %v1274, 1.442695
        %v1385 = vpow.pop %v1384
        %v1386 = vmul.f32 %v1275, 1.442695
        %v1387 = vpow.pop %v1386
        %v1388 = vmul.f32 %v1276, 1.442695
        %v1389 = vpow.pop %v1388
        %v1390 = vmul.f32 %v1277, 1.442695
        %v1391 = vpow.pop %v1390
        %v1392 = vmul.f32 %v1278, 1.442695
        %v1393 = vpow.pop %v1392
        %v1394 = vmul.f32 %v1279, 1.442695
        %v1395 = vpow.pop %v1394
        %v1396 = vmul.f32 %v1280, 1.442695
        %v1397 = vpow.pop %v1396
        %v1398 = vmul.f32 %v1281, 1.442695
        %v1399 = vpow.pop %v1398
        %v1400 = vmul.f32 %v1282, 1.442695
        %v1401 = vpow.pop %v1400
        %v1402 = vmul.f32 %v1283, 1.442695
        %v1403 = vpow.pop %v1402
        %v1404 = vmul.f32 %v1284, 1.442695
        %v1405 = vpow.pop %v1404
        %v1406 = vmul.f32 %v1285, 1.442695
        %v1407 = vpow.pop %v1406
        %v1408 = vmul.f32 %v1286, 1.442695
        %v1409 = vpow.pop %v1408
        %v1410 = vmul.f32 %v1287, 1.442695
        %v1411 = vpow.pop %v1410
        %v1412 = vmul.f32 %v1288, 1.442695
        %v1413 = vpow.pop %v1412
        %v1414 = vmul.f32 %v1289, 1.442695
        %v1415 = vpow.pop %v1414
        %v1416 = vmul.f32 %v1290, 1.442695
        %v1417 = vpow.pop %v1416
        %v1418 = vmul.f32 %v1291, 1.442695
        %v1419 = vpow.pop %v1418
        %v1420 = vadd.f32 %v1293, %v1295
        %1421 = vadd.xlane.f32.xlu0 %v1420
        %v1422 = vpop.xlane.xlu0 %1421
        %v1423 = vadd.f32 %v1297, %v1299
        %1424 = vadd.xlane.f32.xlu0 %v1423
        %v1425 = vpop.xlane.xlu0 %1424
        %v1426 = vadd.f32 %v1301, %v1303
        %1427 = vadd.xlane.f32.xlu0 %v1426
        %v1428 = vpop.xlane.xlu0 %1427
        %v1429 = vadd.f32 %v1305, %v1307
        %1430 = vadd.xlane.f32.xlu0 %v1429
        %v1431 = vpop.xlane.xlu0 %1430
        %v1432 = vadd.f32 %v1309, %v1311
        %1433 = vadd.xlane.f32.xlu0 %v1432
        %v1434 = vpop.xlane.xlu0 %1433
        %v1435 = vadd.f32 %v1313, %v1315
        %1436 = vadd.xlane.f32.xlu0 %v1435
        %v1437 = vpop.xlane.xlu0 %1436
        %v1438 = vadd.f32 %v1317, %v1319
        %1439 = vadd.xlane.f32.xlu0 %v1438
        %v1440 = vpop.xlane.xlu0 %1439
        %v1441 = vadd.f32 %v1321, %v1323
        %1442 = vadd.xlane.f32.xlu0 %v1441
        %v1443 = vpop.xlane.xlu0 %1442
        %v1444 = vadd.f32 %v1325, %v1327
        %1445 = vadd.xlane.f32.xlu0 %v1444
        %v1446 = vpop.xlane.xlu0 %1445
        %v1447 = vadd.f32 %v1329, %v1331
        %1448 = vadd.xlane.f32.xlu0 %v1447
        %v1449 = vpop.xlane.xlu0 %1448
        %v1450 = vadd.f32 %v1333, %v1335
        %1451 = vadd.xlane.f32.xlu0 %v1450
        %v1452 = vpop.xlane.xlu0 %1451
        %v1453 = vadd.f32 %v1337, %v1339
        %1454 = vadd.xlane.f32.xlu0 %v1453
        %v1455 = vpop.xlane.xlu0 %1454
        %v1456 = vadd.f32 %v1341, %v1343
        %1457 = vadd.xlane.f32.xlu0 %v1456
        %v1458 = vpop.xlane.xlu0 %1457
        %v1459 = vadd.f32 %v1345, %v1347
        %1460 = vadd.xlane.f32.xlu0 %v1459
        %v1461 = vpop.xlane.xlu0 %1460
        %v1462 = vadd.f32 %v1349, %v1351
        %1463 = vadd.xlane.f32.xlu0 %v1462
        %v1464 = vpop.xlane.xlu0 %1463
        %v1465 = vadd.f32 %v1353, %v1355
        %1466 = vadd.xlane.f32.xlu0 %v1465
        %v1467 = vpop.xlane.xlu0 %1466
        %v1468 = vadd.f32 %v1357, %v1359
        %1469 = vadd.xlane.f32.xlu0 %v1468
        %v1470 = vpop.xlane.xlu0 %1469
        %v1471 = vadd.f32 %v1361, %v1363
        %1472 = vadd.xlane.f32.xlu0 %v1471
        %v1473 = vpop.xlane.xlu0 %1472
        %v1474 = vadd.f32 %v1365, %v1367
        %1475 = vadd.xlane.f32.xlu0 %v1474
        %v1476 = vpop.xlane.xlu0 %1475
        %v1477 = vadd.f32 %v1369, %v1371
        %1478 = vadd.xlane.f32.xlu0 %v1477
        %v1479 = vpop.xlane.xlu0 %1478
        %v1480 = vadd.f32 %v1373, %v1375
        %1481 = vadd.xlane.f32.xlu0 %v1480
        %v1482 = vpop.xlane.xlu0 %1481
        %v1483 = vadd.f32 %v1377, %v1379
        %1484 = vadd.xlane.f32.xlu0 %v1483
        %v1485 = vpop.xlane.xlu0 %1484
        %v1486 = vadd.f32 %v1381, %v1383
        %1487 = vadd.xlane.f32.xlu0 %v1486
        %v1488 = vpop.xlane.xlu0 %1487
        %v1489 = vadd.f32 %v1385, %v1387
        %1490 = vadd.xlane.f32.xlu0 %v1489
        %v1491 = vpop.xlane.xlu0 %1490
        %v1492 = vadd.f32 %v1389, %v1391
        %1493 = vadd.xlane.f32.xlu0 %v1492
        %v1494 = vpop.xlane.xlu0 %1493
        %v1495 = vadd.f32 %v1393, %v1395
        %1496 = vadd.xlane.f32.xlu0 %v1495
        %v1497 = vpop.xlane.xlu0 %1496
        %v1498 = vadd.f32 %v1397, %v1399
        %1499 = vadd.xlane.f32.xlu0 %v1498
        %v1500 = vpop.xlane.xlu0 %1499
        %v1501 = vadd.f32 %v1401, %v1403
        %1502 = vadd.xlane.f32.xlu0 %v1501
        %v1503 = vpop.xlane.xlu0 %1502
        %v1504 = vadd.f32 %v1405, %v1407
        %1505 = vadd.xlane.f32.xlu0 %v1504
        %v1506 = vpop.xlane.xlu0 %1505
        %v1507 = vadd.f32 %v1409, %v1411
        %1508 = vadd.xlane.f32.xlu0 %v1507
        %v1509 = vpop.xlane.xlu0 %1508
        %v1510 = vadd.f32 %v1413, %v1415
        %1511 = vadd.xlane.f32.xlu0 %v1510
        %v1512 = vpop.xlane.xlu0 %1511
        %v1513 = vadd.f32 %v1417, %v1419
        %1514 = vadd.xlane.f32.xlu0 %v1513
        %v1515 = vpop.xlane.xlu0 %1514
        %v1516 = vrcp.pop %v1422
        %v1517 = vrcp.pop %v1425
        %v1518 = vrcp.pop %v1428
        %v1519 = vrcp.pop %v1431
        %v1520 = vrcp.pop %v1434
        %v1521 = vrcp.pop %v1437
        %v1522 = vrcp.pop %v1440
        %v1523 = vrcp.pop %v1443
        %v1524 = vrcp.pop %v1446
        %v1525 = vrcp.pop %v1449
        %v1526 = vrcp.pop %v1452
        %v1527 = vrcp.pop %v1455
        %v1528 = vrcp.pop %v1458
        %v1529 = vrcp.pop %v1461
        %v1530 = vrcp.pop %v1464
        %v1531 = vrcp.pop %v1467
        %v1532 = vrcp.pop %v1470
        %v1533 = vrcp.pop %v1473
        %v1534 = vrcp.pop %v1476
        %v1535 = vrcp.pop %v1479
        %v1536 = vrcp.pop %v1482
        %v1537 = vrcp.pop %v1485
        %v1538 = vrcp.pop %v1488
        %v1539 = vrcp.pop %v1491
        %v1540 = vrcp.pop %v1494
        %v1541 = vrcp.pop %v1497
        %v1542 = vrcp.pop %v1500
        %v1543 = vrcp.pop %v1503
        %v1544 = vrcp.pop %v1506
        %v1545 = vrcp.pop %v1509
        %v1546 = vrcp.pop %v1512
        %v1547 = vrcp.pop %v1515
        %v1548 = vmul.f32 %v1293, %v1516
        %v1549 = vmul.f32 %v1295, %v1516
        %v1550 = vmul.f32 %v1297, %v1517
        %v1551 = vmul.f32 %v1299, %v1517
        %v1552 = vmul.f32 %v1301, %v1518
        %v1553 = vmul.f32 %v1303, %v1518
        %v1554 = vmul.f32 %v1305, %v1519
        %v1555 = vmul.f32 %v1307, %v1519
        %v1556 = vmul.f32 %v1309, %v1520
        %v1557 = vmul.f32 %v1311, %v1520
        %v1558 = vmul.f32 %v1313, %v1521
        %v1559 = vmul.f32 %v1315, %v1521
        %v1560 = vmul.f32 %v1317, %v1522
        %v1561 = vmul.f32 %v1319, %v1522
        %v1562 = vmul.f32 %v1321, %v1523
        %v1563 = vmul.f32 %v1323, %v1523
        %v1564 = vmul.f32 %v1325, %v1524
        %v1565 = vmul.f32 %v1327, %v1524
        %v1566 = vmul.f32 %v1329, %v1525
        %v1567 = vmul.f32 %v1331, %v1525
        %v1568 = vmul.f32 %v1333, %v1526
        %v1569 = vmul.f32 %v1335, %v1526
        %v1570 = vmul.f32 %v1337, %v1527
        %v1571 = vmul.f32 %v1339, %v1527
        %v1572 = vmul.f32 %v1341, %v1528
        %v1573 = vmul.f32 %v1343, %v1528
        %v1574 = vmul.f32 %v1345, %v1529
        %v1575 = vmul.f32 %v1347, %v1529
        %v1576 = vmul.f32 %v1349, %v1530
        %v1577 = vmul.f32 %v1351, %v1530
        %v1578 = vmul.f32 %v1353, %v1531
        %v1579 = vmul.f32 %v1355, %v1531
        %v1580 = vmul.f32 %v1357, %v1532
        %v1581 = vmul.f32 %v1359, %v1532
        %v1582 = vmul.f32 %v1361, %v1533
        %v1583 = vmul.f32 %v1363, %v1533
        %v1584 = vmul.f32 %v1365, %v1534
        %v1585 = vmul.f32 %v1367, %v1534
        %v1586 = vmul.f32 %v1369, %v1535
        %v1587 = vmul.f32 %v1371, %v1535
        %v1588 = vmul.f32 %v1373, %v1536
        %v1589 = vmul.f32 %v1375, %v1536
        %v1590 = vmul.f32 %v1377, %v1537
        %v1591 = vmul.f32 %v1379, %v1537
        %v1592 = vmul.f32 %v1381, %v1538
        %v1593 = vmul.f32 %v1383, %v1538
        %v1594 = vmul.f32 %v1385, %v1539
        %v1595 = vmul.f32 %v1387, %v1539
        %v1596 = vmul.f32 %v1389, %v1540
        %v1597 = vmul.f32 %v1391, %v1540
        %v1598 = vmul.f32 %v1393, %v1541
        %v1599 = vmul.f32 %v1395, %v1541
        %v1600 = vmul.f32 %v1397, %v1542
        %v1601 = vmul.f32 %v1399, %v1542
        %v1602 = vmul.f32 %v1401, %v1543
        %v1603 = vmul.f32 %v1403, %v1543
        %v1604 = vmul.f32 %v1405, %v1544
        %v1605 = vmul.f32 %v1407, %v1544
        %v1606 = vmul.f32 %v1409, %v1545
        %v1607 = vmul.f32 %v1411, %v1545
        %v1608 = vmul.f32 %v1413, %v1546
        %v1609 = vmul.f32 %v1415, %v1546
        %v1610 = vmul.f32 %v1417, %v1547
        %v1611 = vmul.f32 %v1419, %v1547
        %v1612 = vpack.c.bf16 %v1550, %v1548
        %v1613 = vpack.c.bf16 %v1551, %v1549
        %v1614 = vpack.c.bf16 %v1554, %v1552
        %v1615 = vpack.c.bf16 %v1555, %v1553
        %v1616 = vpack.c.bf16 %v1558, %v1556
        %v1617 = vpack.c.bf16 %v1559, %v1557
        %v1618 = vpack.c.bf16 %v1562, %v1560
        %v1619 = vpack.c.bf16 %v1563, %v1561
        %v1620 = vpack.c.bf16 %v1566, %v1564
        %v1621 = vpack.c.bf16 %v1567, %v1565
        %v1622 = vpack.c.bf16 %v1570, %v1568
        %v1623 = vpack.c.bf16 %v1571, %v1569
        %v1624 = vpack.c.bf16 %v1574, %v1572
        %v1625 = vpack.c.bf16 %v1575, %v1573
        %v1626 = vpack.c.bf16 %v1578, %v1576
        %v1627 = vpack.c.bf16 %v1579, %v1577
        %v1628 = vpack.c.bf16 %v1582, %v1580
        %v1629 = vpack.c.bf16 %v1583, %v1581
        %v1630 = vpack.c.bf16 %v1586, %v1584
        %v1631 = vpack.c.bf16 %v1587, %v1585
        %v1632 = vpack.c.bf16 %v1590, %v1588
        %v1633 = vpack.c.bf16 %v1591, %v1589
        %v1634 = vpack.c.bf16 %v1594, %v1592
        %v1635 = vpack.c.bf16 %v1595, %v1593
        %v1636 = vpack.c.bf16 %v1598, %v1596
        %v1637 = vpack.c.bf16 %v1599, %v1597
        %v1638 = vpack.c.bf16 %v1602, %v1600
        %v1639 = vpack.c.bf16 %v1603, %v1601
        %v1640 = vpack.c.bf16 %v1606, %v1604
        %v1641 = vpack.c.bf16 %v1607, %v1605
        %v1642 = vpack.c.bf16 %v1610, %v1608
        %v1643 = vpack.c.bf16 %v1611, %v1609
        %v1676 = vunpack.c.l.b16 %v1612
        %v1677 = vunpack.c.l.b16 %v1613
        %v1678 = vunpack.c.h.b16 %v1612
        %v1679 = vunpack.c.h.b16 %v1613
        %v1680 = vunpack.c.l.b16 %v1614
        %v1681 = vunpack.c.l.b16 %v1615
        %v1682 = vunpack.c.h.b16 %v1614
        %v1683 = vunpack.c.h.b16 %v1615
        %v1684 = vunpack.c.l.b16 %v1616
        %v1685 = vunpack.c.l.b16 %v1617
        %v1686 = vunpack.c.h.b16 %v1616
        %v1687 = vunpack.c.h.b16 %v1617
        %v1688 = vunpack.c.l.b16 %v1618
        %v1689 = vunpack.c.l.b16 %v1619
        %v1690 = vunpack.c.h.b16 %v1618
        %v1691 = vunpack.c.h.b16 %v1619
        %v1692 = vunpack.c.l.b16 %v1620
        %v1693 = vunpack.c.l.b16 %v1621
        %v1694 = vunpack.c.h.b16 %v1620
        %v1695 = vunpack.c.h.b16 %v1621
        %v1696 = vunpack.c.l.b16 %v1622
        %v1697 = vunpack.c.l.b16 %v1623
        %v1698 = vunpack.c.h.b16 %v1622
        %v1699 = vunpack.c.h.b16 %v1623
        %v1700 = vunpack.c.l.b16 %v1624
        %v1701 = vunpack.c.l.b16 %v1625
        %v1702 = vunpack.c.h.b16 %v1624
        %v1703 = vunpack.c.h.b16 %v1625
        %v1704 = vunpack.c.l.b16 %v1626
        %v1705 = vunpack.c.l.b16 %v1627
        %v1706 = vunpack.c.h.b16 %v1626
        %v1707 = vunpack.c.h.b16 %v1627
        %v1708 = vunpack.c.l.b16 %v1628
        %v1709 = vunpack.c.l.b16 %v1629
        %v1710 = vunpack.c.h.b16 %v1628
        %v1711 = vunpack.c.h.b16 %v1629
        %v1712 = vunpack.c.l.b16 %v1630
        %v1713 = vunpack.c.l.b16 %v1631
        %v1714 = vunpack.c.h.b16 %v1630
        %v1715 = vunpack.c.h.b16 %v1631
        %v1716 = vunpack.c.l.b16 %v1632
        %v1717 = vunpack.c.l.b16 %v1633
        %v1718 = vunpack.c.h.b16 %v1632
        %v1719 = vunpack.c.h.b16 %v1633
        %v1720 = vunpack.c.l.b16 %v1634
        %v1721 = vunpack.c.l.b16 %v1635
        %v1722 = vunpack.c.h.b16 %v1634
        %v1723 = vunpack.c.h.b16 %v1635
        %v1724 = vunpack.c.l.b16 %v1636
        %v1725 = vunpack.c.l.b16 %v1637
        %v1726 = vunpack.c.h.b16 %v1636
        %v1727 = vunpack.c.h.b16 %v1637
        %v1728 = vunpack.c.l.b16 %v1638
        %v1729 = vunpack.c.l.b16 %v1639
        %v1730 = vunpack.c.h.b16 %v1638
        %v1731 = vunpack.c.h.b16 %v1639
        %v1732 = vunpack.c.l.b16 %v1640
        %v1733 = vunpack.c.l.b16 %v1641
        %v1734 = vunpack.c.h.b16 %v1640
        %v1735 = vunpack.c.h.b16 %v1641
        %v1736 = vunpack.c.l.b16 %v1642
        %v1737 = vunpack.c.l.b16 %v1643
        %v1738 = vunpack.c.h.b16 %v1642
        %v1739 = vunpack.c.h.b16 %v1643
        %v1740 = vpack.c.b16 %v1677, %v1676
        %v1741 = vpack.c.b16 %v1679, %v1678
        %v1742 = vpack.c.b16 %v1681, %v1680
        %v1743 = vpack.c.b16 %v1683, %v1682
        %v1744 = vpack.c.b16 %v1685, %v1684
        %v1745 = vpack.c.b16 %v1687, %v1686
        %v1746 = vpack.c.b16 %v1689, %v1688
        %v1747 = vpack.c.b16 %v1691, %v1690
        %v1748 = vpack.c.b16 %v1693, %v1692
        %v1749 = vpack.c.b16 %v1695, %v1694
        %v1750 = vpack.c.b16 %v1697, %v1696
        %v1751 = vpack.c.b16 %v1699, %v1698
        %v1752 = vpack.c.b16 %v1701, %v1700
        %v1753 = vpack.c.b16 %v1703, %v1702
        %v1754 = vpack.c.b16 %v1705, %v1704
        %v1755 = vpack.c.b16 %v1707, %v1706
        %v1756 = vpack.c.b16 %v1709, %v1708
        %v1757 = vpack.c.b16 %v1711, %v1710
        %v1758 = vpack.c.b16 %v1713, %v1712
        %v1759 = vpack.c.b16 %v1715, %v1714
        %v1760 = vpack.c.b16 %v1717, %v1716
        %v1761 = vpack.c.b16 %v1719, %v1718
        %v1762 = vpack.c.b16 %v1721, %v1720
        %v1763 = vpack.c.b16 %v1723, %v1722
        %v1764 = vpack.c.b16 %v1725, %v1724
        %v1765 = vpack.c.b16 %v1727, %v1726
        %v1766 = vpack.c.b16 %v1729, %v1728
        %v1767 = vpack.c.b16 %v1731, %v1730
        %v1768 = vpack.c.b16 %v1733, %v1732
        %v1769 = vpack.c.b16 %v1735, %v1734
        %v1770 = vpack.c.b16 %v1737, %v1736
        %v1771 = vpack.c.b16 %v1739, %v1738
        %1804 = vst [vmem:[%s337] sm:$0xff] %v1740
        %1805 = vst [vmem:[%s337 + $0x8] sm:$0xff] %v1741
        %1806 = vst [vmem:[%s337 + $0x10] sm:$0xff] %v1742
        %1807 = vst [vmem:[%s337 + $0x18] sm:$0xff] %v1743
        %1808 = vst [vmem:[%s337 + $0x20] sm:$0xff] %v1744
        %1809 = vst [vmem:[%s337 + $0x28] sm:$0xff] %v1745
        %1810 = vst [vmem:[%s337 + $0x30] sm:$0xff] %v1746
        %1811 = vst [vmem:[%s337 + $0x38] sm:$0xff] %v1747
        %1812 = vst [vmem:[%s337 + $0x40] sm:$0xff] %v1748
        %1813 = vst [vmem:[%s337 + $0x48] sm:$0xff] %v1749
        %1814 = vst [vmem:[%s337 + $0x50] sm:$0xff] %v1750
        %1815 = vst [vmem:[%s337 + $0x58] sm:$0xff] %v1751
        %1816 = vst [vmem:[%s337 + $0x60] sm:$0xff] %v1752
        %1817 = vst [vmem:[%s337 + $0x68] sm:$0xff] %v1753
        %1818 = vst [vmem:[%s337 + $0x70] sm:$0xff] %v1754
        %1819 = vst [vmem:[%s337 + $0x78] sm:$0xff] %v1755
        %1820 = vst [vmem:[%s337 + $0x80] sm:$0xff] %v1756
        %1821 = vst [vmem:[%s337 + $0x88] sm:$0xff] %v1757
        %1822 = vst [vmem:[%s337 + $0x90] sm:$0xff] %v1758
        %1823 = vst [vmem:[%s337 + $0x98] sm:$0xff] %v1759
        %1824 = vst [vmem:[%s337 + $0xa0] sm:$0xff] %v1760
        %1825 = vst [vmem:[%s337 + $0xa8] sm:$0xff] %v1761
        %1826 = vst [vmem:[%s337 + $0xb0] sm:$0xff] %v1762
        %1827 = vst [vmem:[%s337 + $0xb8] sm:$0xff] %v1763
        %1828 = vst [vmem:[%s337 + $0xc0] sm:$0xff] %v1764
        %1829 = vst [vmem:[%s337 + $0xc8] sm:$0xff] %v1765
        %1830 = vst [vmem:[%s337 + $0xd0] sm:$0xff] %v1766
        %1831 = vst [vmem:[%s337 + $0xd8] sm:$0xff] %v1767
        %1832 = vst [vmem:[%s337 + $0xe0] sm:$0xff] %v1768
        %1833 = vst [vmem:[%s337 + $0xe8] sm:$0xff] %v1769
        %1834 = vst [vmem:[%s337 + $0xf0] sm:$0xff] %v1770
        %1835 = vst [vmem:[%s337 + $0xf8] sm:$0xff] %v1771
        %1852 = vmatprep.subr.bf16.mxu0 0
        %1853 = vmatpush1.bf16.msra.mxu0 %v827
        %1854 = vmatprep.subr.bf16.mxu0 0
        %1855 = vmatpush1.bf16.msra.mxu0 %v828
        %1856 = vmatprep.subr.bf16.mxu0 0
        %1857 = vmatpush1.bf16.msra.mxu0 %v829
        %1858 = vmatprep.subr.bf16.mxu0 0
        %1859 = vmatpush1.bf16.msra.mxu0 %v830
        %1860 = vmatprep.subr.bf16.mxu0 0
        %1861 = vmatpush1.bf16.msra.mxu0 %v831
        %1862 = vmatprep.subr.bf16.mxu0 0
        %1863 = vmatpush1.bf16.msra.mxu0 %v832
        %1864 = vmatprep.subr.bf16.mxu0 0
        %1865 = vmatpush1.bf16.msra.mxu0 %v833
        %1866 = vmatprep.subr.bf16.mxu0 0
        %1867 = vmatpush1.bf16.msra.mxu0 %v834
        %1868 = vmatprep.subr.bf16.mxu0 0
        %1869 = vmatpush1.bf16.msra.mxu0 %v835
        %1870 = vmatprep.subr.bf16.mxu0 0
        %1871 = vmatpush1.bf16.msra.mxu0 %v836
        %1872 = vmatprep.subr.bf16.mxu0 0
        %1873 = vmatpush1.bf16.msra.mxu0 %v837
        %1874 = vmatprep.subr.bf16.mxu0 0
        %1875 = vmatpush1.bf16.msra.mxu0 %v838
        %1876 = vmatprep.subr.bf16.mxu0 0
        %1877 = vmatpush1.bf16.msra.mxu0 %v839
        %1878 = vmatprep.subr.bf16.mxu0 0
        %1879 = vmatpush1.bf16.msra.mxu0 %v840
        %1880 = vmatprep.subr.bf16.mxu0 0
        %1881 = vmatpush1.bf16.msra.mxu0 %v841
        %1882 = vmatprep.subr.bf16.mxu0 0
        %1883 = vmatpush1.bf16.msra.mxu0 %v842
        %1884 = vmatprep.mubr.bf16.mxu0 %v1613
        %1885 = vmatmul.mubr.bf16.gmra.mrb[0].mxu0 %v1612
        %v1886 = vpop.f32.mrb[0].mxu0
        %v1887 = vadd.f32 0.0, %v1886
        %v1888 = vpop.f32.mrb[0].mxu0
        %v1889 = vpop.f32.mrb[0].mxu0
        %v1890 = vadd.f32 0.0, %v1889
        %v1891 = vpop.f32.mrb[0].mxu0
        %1892 = vmatprep.mubr.bf16.mxu0 %v1615
        %1893 = vmatmul.mubr.bf16.gmra.mrb[0].mxu0 %v1614
        %v1894 = vpop.f32.mrb[0].mxu0
        %v1895 = vadd.f32 0.0, %v1894
        %v1896 = vpop.f32.mrb[0].mxu0
        %v1897 = vpop.f32.mrb[0].mxu0
        %v1898 = vadd.f32 0.0, %v1897
        %v1899 = vpop.f32.mrb[0].mxu0
        %1900 = vmatprep.mubr.bf16.mxu0 %v1617
        %1901 = vmatmul.mubr.bf16.gmra.mrb[0].mxu0 %v1616
        %v1902 = vpop.f32.mrb[0].mxu0
        %v1903 = vadd.f32 0.0, %v1902
        %v1904 = vpop.f32.mrb[0].mxu0
        %v1905 = vpop.f32.mrb[0].mxu0
        %v1906 = vadd.f32 0.0, %v1905
        %v1907 = vpop.f32.mrb[0].mxu0
        %1908 = vmatprep.mubr.bf16.mxu0 %v1619
        %1909 = vmatmul.mubr.bf16.gmra.mrb[0].mxu0 %v1618
        %v1910 = vpop.f32.mrb[0].mxu0
        %v1911 = vadd.f32 0.0, %v1910
        %v1912 = vpop.f32.mrb[0].mxu0
        %v1913 = vpop.f32.mrb[0].mxu0
        %v1914 = vadd.f32 0.0, %v1913
        %v1915 = vpop.f32.mrb[0].mxu0
        %1916 = vmatprep.mubr.bf16.mxu0 %v1621
        %1917 = vmatmul.mubr.bf16.gmra.mrb[0].mxu0 %v1620
        %v1918 = vpop.f32.mrb[0].mxu0
        %v1919 = vadd.f32 0.0, %v1918
        %v1920 = vpop.f32.mrb[0].mxu0
        %v1921 = vpop.f32.mrb[0].mxu0
        %v1922 = vadd.f32 0.0, %v1921
        %v1923 = vpop.f32.mrb[0].mxu0
        %1924 = vmatprep.mubr.bf16.mxu0 %v1623
        %1925 = vmatmul.mubr.bf16.gmra.mrb[0].mxu0 %v1622
        %v1926 = vpop.f32.mrb[0].mxu0
        %v1927 = vadd.f32 0.0, %v1926
        %v1928 = vpop.f32.mrb[0].mxu0
        %v1929 = vpop.f32.mrb[0].mxu0
        %v1930 = vadd.f32 0.0, %v1929
        %v1931 = vpop.f32.mrb[0].mxu0
        %1932 = vmatprep.mubr.bf16.mxu0 %v1625
        %1933 = vmatmul.mubr.bf16.gmra.mrb[0].mxu0 %v1624
        %v1934 = vpop.f32.mrb[0].mxu0
        %v1935 = vadd.f32 0.0, %v1934
        %v1936 = vpop.f32.mrb[0].mxu0
        %v1937 = vpop.f32.mrb[0].mxu0
        %v1938 = vadd.f32 0.0, %v1937
        %v1939 = vpop.f32.mrb[0].mxu0
        %1940 = vmatprep.mubr.bf16.mxu0 %v1627
        %1941 = vmatmul.mubr.bf16.gmra.mrb[0].mxu0 %v1626
        %v1942 = vpop.f32.mrb[0].mxu0
        %v1943 = vadd.f32 0.0, %v1942
        %v1944 = vpop.f32.mrb[0].mxu0
        %v1945 = vpop.f32.mrb[0].mxu0
        %v1946 = vadd.f32 0.0, %v1945
        %v1947 = vpop.f32.mrb[0].mxu0
        %1948 = vmatprep.mubr.bf16.mxu0 %v1629
        %1949 = vmatmul.mubr.bf16.gmra.mrb[0].mxu0 %v1628
        %v1950 = vpop.f32.mrb[0].mxu0
        %v1951 = vadd.f32 0.0, %v1950
        %v1952 = vpop.f32.mrb[0].mxu0
        %v1953 = vpop.f32.mrb[0].mxu0
        %v1954 = vadd.f32 0.0, %v1953
        %v1955 = vpop.f32.mrb[0].mxu0
        %1956 = vmatprep.mubr.bf16.mxu0 %v1631
        %1957 = vmatmul.mubr.bf16.gmra.mrb[0].mxu0 %v1630
        %v1958 = vpop.f32.mrb[0].mxu0
        %v1959 = vadd.f32 0.0, %v1958
        %v1960 = vpop.f32.mrb[0].mxu0
        %v1961 = vpop.f32.mrb[0].mxu0
        %v1962 = vadd.f32 0.0, %v1961
        %v1963 = vpop.f32.mrb[0].mxu0
        %1964 = vmatprep.mubr.bf16.mxu0 %v1633
        %1965 = vmatmul.mubr.bf16.gmra.mrb[0].mxu0 %v1632
        %v1966 = vpop.f32.mrb[0].mxu0
        %v1967 = vadd.f32 0.0, %v1966
        %v1968 = vpop.f32.mrb[0].mxu0
        %v1969 = vpop.f32.mrb[0].mxu0
        %v1970 = vadd.f32 0.0, %v1969
        %v1971 = vpop.f32.mrb[0].mxu0
        %1972 = vmatprep.mubr.bf16.mxu0 %v1635
        %1973 = vmatmul.mubr.bf16.gmra.mrb[0].mxu0 %v1634
        %v1974 = vpop.f32.mrb[0].mxu0
        %v1975 = vadd.f32 0.0, %v1974
        %v1976 = vpop.f32.mrb[0].mxu0
        %v1977 = vpop.f32.mrb[0].mxu0
        %v1978 = vadd.f32 0.0, %v1977
        %v1979 = vpop.f32.mrb[0].mxu0
        %1980 = vmatprep.mubr.bf16.mxu0 %v1637
        %1981 = vmatmul.mubr.bf16.gmra.mrb[0].mxu0 %v1636
        %v1982 = vpop.f32.mrb[0].mxu0
        %v1983 = vadd.f32 0.0, %v1982
        %v1984 = vpop.f32.mrb[0].mxu0
        %v1985 = vpop.f32.mrb[0].mxu0
        %v1986 = vadd.f32 0.0, %v1985
        %v1987 = vpop.f32.mrb[0].mxu0
        %1988 = vmatprep.mubr.bf16.mxu0 %v1639
        %1989 = vmatmul.mubr.bf16.gmra.mrb[0].mxu0 %v1638
        %v1990 = vpop.f32.mrb[0].mxu0
        %v1991 = vadd.f32 0.0, %v1990
        %v1992 = vpop.f32.mrb[0].mxu0
        %v1993 = vpop.f32.mrb[0].mxu0
        %v1994 = vadd.f32 0.0, %v1993
        %v1995 = vpop.f32.mrb[0].mxu0
        %1996 = vmatprep.mubr.bf16.mxu0 %v1641
        %1997 = vmatmul.mubr.bf16.gmra.mrb[0].mxu0 %v1640
        %v1998 = vpop.f32.mrb[0].mxu0
        %v1999 = vadd.f32 0.0, %v1998
        %v2000 = vpop.f32.mrb[0].mxu0
        %v2001 = vpop.f32.mrb[0].mxu0
        %v2002 = vadd.f32 0.0, %v2001
        %v2003 = vpop.f32.mrb[0].mxu0
        %2004 = vmatprep.mubr.bf16.mxu0 %v1643
        %2005 = vmatmul.mubr.bf16.gmra.mrb[0].mxu0 %v1642
        %v2006 = vpop.f32.mrb[0].mxu0
        %v2007 = vadd.f32 0.0, %v2006
        %v2008 = vpop.f32.mrb[0].mxu0
        %v2009 = vpop.f32.mrb[0].mxu0
        %v2010 = vadd.f32 0.0, %v2009
        %v2011 = vpop.f32.mrb[0].mxu0
        %2012 = vdwg.mxu0
        %v2013 = vld [vmem:[%s4] sm:$0xf]
        %v2014 = vld [vmem:[%s4 + $0x4] sm:$0xf]
        %v2015 = vld [vmem:[%s4 + $0x8] sm:$0xf]
        %v2016 = vld [vmem:[%s4 + $0xc] sm:$0xf]
        %v2017 = vpack.c.bf16 %v1890, %v1887
        %v2018 = vpack.c.bf16 %v1898, %v1895
        %v2019 = vpack.c.bf16 %v1906, %v1903
        %v2020 = vpack.c.bf16 %v1914, %v1911
        %v2021 = vpack.c.bf16 %v1922, %v1919
        %v2022 = vpack.c.bf16 %v1930, %v1927
        %v2023 = vpack.c.bf16 %v1938, %v1935
        %v2024 = vpack.c.bf16 %v1946, %v1943
        %v2025 = vpack.c.bf16 %v1954, %v1951
        %v2026 = vpack.c.bf16 %v1962, %v1959
        %v2027 = vpack.c.bf16 %v1970, %v1967
        %v2028 = vpack.c.bf16 %v1978, %v1975
        %v2029 = vpack.c.bf16 %v1986, %v1983
        %v2030 = vpack.c.bf16 %v1994, %v1991
        %v2031 = vpack.c.bf16 %v2002, %v1999
        %v2032 = vpack.c.bf16 %v2010, %v2007
        %v2033 = vld [vmem:[%s5] sm:$0xff]
        %v2034 = vld [vmem:[%s5 + $0x8] sm:$0xff]
        %v2035 = vld [vmem:[%s5 + $0x10] sm:$0xff]
        %v2036 = vld [vmem:[%s5 + $0x18] sm:$0xff]
        %2038 = vset.pattern.permute.xlu0 0
        %2039 = vperm.xlu0 %2038, %v2033
        %v2040 = vpop.permute.xlu0 %2039
        %2043 = vset.pattern.permute.xlu0 0
        %2044 = vperm.xlu0 %2043, %v2034
        %v2045 = vpop.permute.xlu0 %2044
        %2048 = vset.pattern.permute.xlu0 0
        %2049 = vperm.xlu0 %2048, %v2035
        %v2050 = vpop.permute.xlu0 %2049
        %2053 = vset.pattern.permute.xlu0 0
        %2054 = vperm.xlu0 %2053, %v2036
        %v2055 = vpop.permute.xlu0 %2054
        %v2061 = vunpack.c.l.b16 %v2013
        %v2062 = vunpack.c.l.b16 %v2014
        %v2063 = vunpack.c.l.b16 %v2015
        %v2064 = vunpack.c.l.b16 %v2016
        %v2065 = vpack.c.b16 %v2062, %v2061
        %v2066 = vpack.c.b16 %v2064, %v2063
        %v2068 = vsel %vm525, %v2065, 0
        %v2071 = vsel %vm525, %v2066, 0
        %v2074 = vsel %vm525, %v2017, 0
        %v2077 = vsel %vm525, %v2018, 0
        %v2080 = vsel %vm525, %v2019, 0
        %v2083 = vsel %vm525, %v2020, 0
        %v2086 = vsel %vm525, %v2021, 0
        %v2089 = vsel %vm525, %v2022, 0
        %v2092 = vsel %vm525, %v2023, 0
        %v2095 = vsel %vm525, %v2024, 0
        %v2098 = vsel %vm525, %v2025, 0
        %v2101 = vsel %vm525, %v2026, 0
        %v2104 = vsel %vm525, %v2027, 0
        %v2107 = vsel %vm525, %v2028, 0
        %v2110 = vsel %vm525, %v2029, 0
        %v2113 = vsel %vm525, %v2030, 0
        %v2116 = vsel %vm525, %v2031, 0
        %v2119 = vsel %vm525, %v2032, 0
        %2121 = vmatprep.subr.bf16.mxu0 0
        %2122 = vmatpush1.bf16.xpose.msra.mxu0 %v2074
        %2123 = vmatprep.subr.bf16.mxu0 0
        %2124 = vmatpush1.bf16.xpose.msra.mxu0 %v2077
        %2125 = vmatprep.subr.bf16.mxu0 0
        %2126 = vmatpush1.bf16.xpose.msra.mxu0 %v2080
        %2127 = vmatprep.subr.bf16.mxu0 0
        %2128 = vmatpush1.bf16.xpose.msra.mxu0 %v2083
        %2129 = vmatprep.subr.bf16.mxu0 0
        %2130 = vmatpush1.bf16.xpose.msra.mxu0 %v2086
        %2131 = vmatprep.subr.bf16.mxu0 0
        %2132 = vmatpush1.bf16.xpose.msra.mxu0 %v2089
        %2133 = vmatprep.subr.bf16.mxu0 0
        %2134 = vmatpush1.bf16.xpose.msra.mxu0 %v2092
        %2135 = vmatprep.subr.bf16.mxu0 0
        %2136 = vmatpush1.bf16.xpose.msra.mxu0 %v2095
        %2137 = vmatprep.subr.bf16.mxu0 0
        %2138 = vmatpush1.bf16.xpose.msra.mxu0 %v2098
        %2139 = vmatprep.subr.bf16.mxu0 0
        %2140 = vmatpush1.bf16.xpose.msra.mxu0 %v2101
        %2141 = vmatprep.subr.bf16.mxu0 0
        %2142 = vmatpush1.bf16.xpose.msra.mxu0 %v2104
        %2143 = vmatprep.subr.bf16.mxu0 0
        %2144 = vmatpush1.bf16.xpose.msra.mxu0 %v2107
        %2145 = vmatprep.subr.bf16.mxu0 0
        %2146 = vmatpush1.bf16.xpose.msra.mxu0 %v2110
        %2147 = vmatprep.subr.bf16.mxu0 0
        %2148 = vmatpush1.bf16.xpose.msra.mxu0 %v2113
        %2149 = vmatprep.subr.bf16.mxu0 0
        %2150 = vmatpush1.bf16.xpose.msra.mxu0 %v2116
        %2151 = vmatprep.subr.bf16.mxu0 0
        %2152 = vmatpush1.bf16.xpose.msra.mxu0 %v2119
        %2153 = vmatprep.mubr.bf16.mxu0 0
        %2154 = vmatmul.mubr.bf16.gmra.mrb[0].mxu0 %v2068
        %v2155 = vpop.f32.mrb[0].mxu0
        %v2156 = vadd.f32 %v2040, %v2155
        %v2157 = vpop.f32.mrb[0].mxu0
        %v2158 = vadd.f32 %v2040, %v2157
        %v2159 = vpop.f32.mrb[0].mxu0
        %v2160 = vadd.f32 %v2045, %v2159
        %v2161 = vpop.f32.mrb[0].mxu0
        %v2162 = vadd.f32 %v2045, %v2161
        %2163 = vmatprep.mubr.bf16.mxu0 0
        %2164 = vmatmul.mubr.bf16.gmra.mrb[0].mxu0 %v2071
        %v2165 = vpop.f32.mrb[0].mxu0
        %v2166 = vadd.f32 %v2050, %v2165
        %v2167 = vpop.f32.mrb[0].mxu0
        %v2168 = vadd.f32 %v2050, %v2167
        %v2169 = vpop.f32.mrb[0].mxu0
        %v2170 = vadd.f32 %v2055, %v2169
        %v2171 = vpop.f32.mrb[0].mxu0
        %v2172 = vadd.f32 %v2055, %v2171
        %2173 = vdwg.mxu0
        %v2174 = vld [vmem:[%s351] sm:$0xff]
        %v2175 = vld [vmem:[%s351 + $0x8] sm:$0xff]
        %v2176 = vld [vmem:[%s351 + $0x10] sm:$0xff]
        %v2177 = vld [vmem:[%s351 + $0x18] sm:$0xff]
        %v2178 = vld [vmem:[%s351 + $0x20] sm:$0xff]
        %v2179 = vld [vmem:[%s351 + $0x28] sm:$0xff]
        %v2180 = vld [vmem:[%s351 + $0x30] sm:$0xff]
        %v2181 = vld [vmem:[%s351 + $0x38] sm:$0xff]
        %v2182 = vadd.f32 %v2156, %v2174
        %v2183 = vadd.f32 %v2158, %v2175
        %v2184 = vadd.f32 %v2160, %v2176
        %v2185 = vadd.f32 %v2162, %v2177
        %v2186 = vadd.f32 %v2166, %v2178
        %v2187 = vadd.f32 %v2168, %v2179
        %v2188 = vadd.f32 %v2170, %v2180
        %v2189 = vadd.f32 %v2172, %v2181
        %2190 = vst [vmem:[%s330] sm:$0xff] %v2182
        %2191 = vst [vmem:[%s330 + $0x8] sm:$0xff] %v2183
        %2192 = vst [vmem:[%s330 + $0x10] sm:$0xff] %v2184
        %2193 = vst [vmem:[%s330 + $0x18] sm:$0xff] %v2185
        %2194 = vst [vmem:[%s330 + $0x20] sm:$0xff] %v2186
        %2195 = vst [vmem:[%s330 + $0x28] sm:$0xff] %v2187
        %2196 = vst [vmem:[%s330 + $0x30] sm:$0xff] %v2188
        %2197 = vst [vmem:[%s330 + $0x38] sm:$0xff] %v2189
        %s2198 = sand.u32 %s190, 1
        %s2199 = scalar_lea.sflag [#allocation3], %s2198
        %s2200 = sand.u32 %s190, 1
        %s2201 = smul.addr %s2200, 64
        %s2202 = scalar_lea.vmem [#allocation2], %s2201
        %s2203 = sand.u32 %s218, 1
        %s2204 = scalar_lea.sflag [#allocation5], %s2203
        %s2205 = sand.u32 %s218, 1
        %s2206 = smul.addr %s2205, 256
        %s2207 = scalar_lea.vmem [#allocation4], %s2206
        // Predicated region
        $region45: #{tpu_custom_call.1} parent=43 // pred_check
          %p2208 = pneg %p200
        $region46: #{tpu_custom_call.1} parent=43 // pred_check_branch
          %2210 = sbr.rel (%p2208) target = $region48
        $region47: #{tpu_custom_call.1} parent=43 // pred_region
          %s2211 = smul.u32 2, %s30
          %s2213 = ssub.s32 1024, 1024
          %2214 = vsyncadd %s2199, %s2213
          %s2215 = smul.addr %s29, 8
          %s2216 = sadd.s32 %s2211, %s2215
          %s2217 = smul.addr %s2216, 128
          %s2218 = scalar_lea.hbm %s6, %s2217
          %s2219 = sshll.u32 %s2202, 4
          %s2220 = int_to_ptr.vmem [resolvable:$true] %s2219
          %2225 = dma.vmem_to_hbm [thread:$0]  %s2220, 1024, %s2218, %s2199, 256, 256, 16
        $region48: #{tpu_custom_call.1} parent=43 // pred_fallthru
          _
        // Predicated region
        $region49: #{tpu_custom_call.1} parent=43 // pred_check
          %p2226 = pneg %p228
        $region50: #{tpu_custom_call.1} parent=43 // pred_check_branch
          %2228 = sbr.rel (%p2226) target = $region52
        $region51: #{tpu_custom_call.1} parent=43 // pred_region
          %s2229 = smul.u32 32, %s30
          %s2231 = ssub.s32 4096, 4096
          %2232 = vsyncadd %s2204, %s2231
          %s2233 = smul.addr %s2229, 2
          %s2234 = smul.addr %s29, 64
          %s2235 = sadd.s32 %s2233, %s2234
          %s2236 = smul.addr %s2235, 64
          %s2237 = scalar_lea.hbm %s7, %s2236
          %s2238 = sshll.u32 %s2207, 4
          %s2239 = int_to_ptr.vmem [resolvable:$true] %s2238
          %2244 = dma.vmem_to_hbm [thread:$0]  %s2239, 4096, %s2237, %s2204, 128, 128, 8
        $region52: #{tpu_custom_call.1} parent=43 // pred_fallthru
          _
      $region44: #{tpu_custom_call.1} parent=5 // pred_fallthru
        _
      %p2245 = scmp.le.s32.totalorder 2, %s20
      // Predicated region
      $region53: #{tpu_custom_call.1} parent=5 // pred_check
        %p2246 = pneg %p2245
      $region54: #{tpu_custom_call.1} parent=5 // pred_check_branch
        %2248 = sbr.rel (%p2246) target = $region56
      $region55: #{tpu_custom_call.1} parent=5 // pred_region
        %s2249 = ssub.s32 %s20, 2
        // Predicated region
        $region57: #{tpu_custom_call.1} parent=55 // pred_check
          %p2250 = pneg %p206
        $region58: #{tpu_custom_call.1} parent=55 // pred_check_branch
          %2252 = sbr.rel (%p2250) target = $region60
        $region59: #{tpu_custom_call.1} parent=55 // pred_region
          %s2253 = sand.u32 %s191, 1
          %s2254 = scalar_lea.sflag [#allocation3], %s2253
          %s2255 = sand.u32 %s191, 1
          %s2256 = smul.addr %s2255, 64
          %s2257 = scalar_lea.vmem [#allocation2], %s2256
          %2258 = dma.done %s2254, 1024
        $region60: #{tpu_custom_call.1} parent=55 // pred_fallthru
          _
        // Predicated region
        $region61: #{tpu_custom_call.1} parent=55 // pred_check
          %p2259 = pneg %p234
        $region62: #{tpu_custom_call.1} parent=55 // pred_check_branch
          %2261 = sbr.rel (%p2259) target = $region64
        $region63: #{tpu_custom_call.1} parent=55 // pred_region
          %s2262 = sand.u32 %s219, 1
          %s2263 = scalar_lea.sflag [#allocation5], %s2262
          %s2264 = sand.u32 %s219, 1
          %s2265 = smul.addr %s2264, 256
          %s2266 = scalar_lea.vmem [#allocation4], %s2265
          %2267 = dma.done %s2263, 4096
        $region64: #{tpu_custom_call.1} parent=55 // pred_fallthru
          _
      $region56: #{tpu_custom_call.1} parent=5 // pred_fallthru
        _
    $region6: #{tpu_custom_call.1} parent=1 // loop_footer
      %s24 = sadd.s32 1, %s20
    $region7: #{tpu_custom_call.1} parent=1 // loop_footer_branch
      %19 = sbr.rel target = $region3
    $region8: #{tpu_custom_call.1} parent=1 // loop_exit
      _
    %2268 = vsyncpa [#allocation3], 1
    %s2269 = scalar_lea.sflag [#allocation3], 1
    %2270 = vsyncpa %s2269, 1
    %2271 = vsyncpa [#allocation5], 1
    %s2272 = scalar_lea.sflag [#allocation5], 1
    %2273 = vsyncpa %s2272, 1

</llo_original>
